<compile_context>
chip_gen: v7x
topology: tpu7x:2x2x1
jax: 0.10.0
libtpu: 0.0.40
codegen_flags: <defaults>
</compile_context>

<pallas_src>
import jax
import jax.numpy as jnp
from jax import lax
from jax.experimental import pallas as pl
from jax.experimental.pallas import tpu as pltpu

EMBEDDING_DIM = 64
LATENT_DIM = 32
LN_EPS = 1e-5


def encoder_vae_kernel(x_ref, wih_ref, whh_ref, b_ref, gamma_ref, beta_ref,
                       aw_ref, ab_ref, hw_ref, hb_ref,
                       heads_ref, out_ref, attn_ref):
    # x_ref:   (T*B_pad, F)  time-major rows (t major, b minor), batch padded to 8.
    # wih_ref: (F, 4H), whh_ref: (H, 4H), b_ref: (1, 4H)
    #          gate columns ordered [input | forget | output | cell]
    # heads_ref: (B_pad, 2L)   out_ref: (T, B_pad*H)   attn_ref: (B_pad, T)
    TB, _ = x_ref.shape
    H = whh_ref.shape[0]
    B = heads_ref.shape[0]          # padded batch (multiple of 8 sublanes)
    T = TB // B

    # ---- Hoisted input projection: one matmul for all timesteps + bias. ----
    proj = jnp.dot(x_ref[...], wih_ref[...],
                   preferred_element_type=jnp.float32) + b_ref[...]   # (T*B,4H)
    whh = whh_ref[...]                                                # (H, 4H)

    # ---- Recurrence: one fused (B,H)@(H,4H) matmul per step, unrolled. ----
    # Hidden states accumulated in vregs (Python list), no VMEM scratch.
    h = jnp.zeros((B, H), jnp.float32)
    c = jnp.zeros((B, H), jnp.float32)
    hs = []
    for t in range(T):
        gates = jnp.dot(h, whh, preferred_element_type=jnp.float32) \
            + proj[t * B:(t + 1) * B, :]                              # (B, 4H)
        # Full-width, unmasked EUP sweeps; static 64-wide slices afterwards.
        sig = jax.nn.sigmoid(gates)                                   # (B, 4H)
        tnh = jnp.tanh(gates)                                         # (B, 4H)
        i_g = sig[:, :H]
        f_g = sig[:, H:2 * H]
        o_g = sig[:, 2 * H:3 * H]
        g_g = tnh[:, 3 * H:]
        c = f_g * c + i_g * g_g
        h = o_g * jnp.tanh(c)
        hs.append(h)

    lstm = jnp.stack(hs, axis=0)                 # (T, B, H), register-resident

    # TODO(synk): nn.Dropout(p=0.2) layers are identity here (inference mode).
    # ---- LayerNorm over features (biased variance, eps = 1e-5). ----
    mean = jnp.mean(lstm, axis=-1, keepdims=True)
    var = jnp.mean((lstm - mean) ** 2, axis=-1, keepdims=True)
    normed = (lstm - mean) * lax.rsqrt(var + LN_EPS)
    normed = normed * gamma_ref[...] + beta_ref[...]

    # Lane-dense single writeback of the normed output: (T, B*H) = (8, 512).
    out_ref[...] = normed.reshape(T, B * H)

    # ---- Attention: Linear(H,1) + softmax over time, fully vectorized. ----
    logits_tm = jnp.sum(normed * aw_ref[...], axis=-1, keepdims=True) \
        + ab_ref[...]                                                 # (T, B, 1)
    m = jnp.max(logits_tm, axis=0, keepdims=True)
    e = jnp.exp(logits_tm - m)
    attn_tm = e / jnp.sum(e, axis=0, keepdims=True)                   # (T, B, 1)
    context = jnp.sum(normed * attn_tm, axis=0)                       # (B, H)
    attn_ref[...] = attn_tm.reshape(T, B).T                           # (B, T)

    # ---- Fused [fc_mu | fc_logvar] head: one (B,H)@(H,2L) matmul. ----
    heads_ref[...] = jnp.dot(context, hw_ref[...],
                             preferred_element_type=jnp.float32) + hb_ref[...]


@jax.jit
def encoder_vae_forward(x, params):
    """x: (B, T, n_features) float32. Returns (mu, logvar, out, attn_weights)."""
    B, T, F = x.shape
    H = params["wih"].shape[2]
    L = params["muw"].shape[1]
    B_pad = ((B + 7) // 8) * 8                   # pad batch to a sublane tile

    # Repack PyTorch-style params into the fused kernel layouts.
    order = (0, 1, 3, 2)                                   # [i, f, o, g]
    wih_cat = jnp.concatenate([params["wih"][k] for k in order], axis=1)  # (F,4H)
    whh_cat = jnp.concatenate([params["whh"][k] for k in order], axis=1)  # (H,4H)
    b_cat = jnp.concatenate([params["b"][k] for k in order], axis=1)      # (1,4H)
    hw = jnp.concatenate([params["muw"], params["lvw"]], axis=1)          # (H,2L)
    hb = jnp.concatenate([params["mub"], params["lvb"]], axis=1)          # (1,2L)

    # Time-major, batch-padded, flattened rows (t major, b minor).
    x_pad = jnp.pad(x.astype(jnp.float32), ((0, B_pad - B), (0, 0), (0, 0)))
    x_flat = jnp.transpose(x_pad, (1, 0, 2)).reshape(T * B_pad, F)

    inputs = (x_flat, wih_cat, whh_cat, b_cat, params["gamma"], params["beta"],
              params["aw"], params["ab"], hw, hb)

    out_shapes = (
        jax.ShapeDtypeStruct((B_pad, 2 * L), jnp.float32),   # [mu | logvar]
        jax.ShapeDtypeStruct((T, B_pad * H), jnp.float32),   # normed (lane-dense)
        jax.ShapeDtypeStruct((B_pad, T), jnp.float32),       # attention weights
    )

    vmem_spec = pl.BlockSpec(memory_space=pltpu.MemorySpace.VMEM)

    # Single-invocation call: no grid, no pipelining overhead, no double-buffer.
    heads, out_flat, attn_bt = pl.pallas_call(
        encoder_vae_kernel,
        out_shape=out_shapes,
        in_specs=[vmem_spec] * len(inputs),
        out_specs=tuple([vmem_spec] * len(out_shapes)),
    )(*inputs)

    mu = heads[:B, :L]
    logvar = heads[:B, L:2 * L]
    out = out_flat.reshape(T, B_pad, H)[:, :B, :].transpose(1, 0, 2)  # (B, T, H)
    attn = attn_bt[:B, :, None]                                       # (B, T, 1)
    return mu, logvar, out, attn


def init_params(key, n_features, hidden_dim=EMBEDDING_DIM,
                latent_dim=LATENT_DIM):
    ks = jax.random.split(key, 10)
    s = 1.0 / float(jnp.sqrt(hidden_dim))

    def u(k, shape, scale):
        return jax.random.uniform(k, shape, jnp.float32, -scale, scale)

    return {
        # LSTM weights per-gate, transposed: (4, in, H), gate order [i, f, g, o]
        "wih": u(ks[0], (4, n_features, hidden_dim), s),
        "whh": u(ks[1], (4, hidden_dim, hidden_dim), s),
        # combined bias_ih + bias_hh
        "b": u(ks[2], (4, 1, hidden_dim), s) + u(ks[3], (4, 1, hidden_dim), s),
        # LayerNorm
        "gamma": jnp.ones((1, hidden_dim), jnp.float32),
        "beta": jnp.zeros((1, hidden_dim), jnp.float32),
        # Attention: Linear(H, 1) weight as row vector + scalar bias
        "aw": u(ks[4], (1, hidden_dim), s),
        "ab": u(ks[5], (1, 1), s),
        # fc_mu / fc_logvar (stored transposed: (H, L))
        "muw": u(ks[6], (hidden_dim, latent_dim), s),
        "mub": u(ks[7], (1, latent_dim), s),
        "lvw": u(ks[8], (hidden_dim, latent_dim), s),
        "lvb": u(ks[9], (1, latent_dim), s),
    }


def reference_forward(x, p):
    """Pure-JAX reference matching PyTorch semantics (eval mode)."""
    B, T, F = x.shape
    H = p["wih"].shape[2]
    x_tm = jnp.transpose(x, (1, 0, 2))

    def cell(carry, xt):
        h, c = carry
        gates = [xt @ p["wih"][k] + h @ p["whh"][k] + p["b"][k]
                 for k in range(4)]
        i = jax.nn.sigmoid(gates[0])
        f = jax.nn.sigmoid(gates[1])
        g = jnp.tanh(gates[2])
        o = jax.nn.sigmoid(gates[3])
        c = f * c + i * g
        h = o * jnp.tanh(c)
        return (h, c), h

    (_, _), hs = lax.scan(cell,
                          (jnp.zeros((B, H), jnp.float32),
                           jnp.zeros((B, H), jnp.float32)),
                          x_tm)
    out_tm = hs                                       # (T, B, H)
    mean = out_tm.mean(-1, keepdims=True)
    var = ((out_tm - mean) ** 2).mean(-1, keepdims=True)
    normed = (out_tm - mean) / jnp.sqrt(var + LN_EPS) * p["gamma"] + p["beta"]
    logits = jnp.sum(normed * p["aw"], -1, keepdims=True) + p["ab"]
    attn = jax.nn.softmax(logits, axis=0)
    context = jnp.sum(normed * attn, axis=0)
    mu = context @ p["muw"] + p["mub"]
    lv = context @ p["lvw"] + p["lvb"]
    return (mu, lv,
            jnp.transpose(normed, (1, 0, 2)),
            jnp.transpose(attn, (1, 0, 2)))


if __name__ == "__main__":
    key = jax.random.PRNGKey(0)
    pkey, xkey = jax.random.split(key)

    B, T, F = 2, 8, 4                      # batch, seq_len, n_features
    params = init_params(pkey, F)
    x = jax.random.normal(xkey, (B, T, F), jnp.float32)

    mu, logvar, out, attn = encoder_vae_forward(x, params)
    jax.block_until_ready((mu, logvar, out, attn))

    rmu, rlv, rout, rattn = reference_forward(x, params)
    assert mu.shape == (B, LATENT_DIM) and logvar.shape == (B, LATENT_DIM)
    assert out.shape == (B, T, EMBEDDING_DIM) and attn.shape == (B, T, 1)
    assert jnp.allclose(mu, rmu, atol=1e-4, rtol=1e-4)
    assert jnp.allclose(logvar, rlv, atol=1e-4, rtol=1e-4)
    assert jnp.allclose(out, rout, atol=1e-4, rtol=1e-4)
    assert jnp.allclose(attn, rattn, atol=1e-4, rtol=1e-4)

    print("KERNEL_OK")
</pallas_src>

<mosaic_0001>
module attributes {stable_mosaic.version = 11 : i64} {
  func.func @encoder_vae_kernel(%arg0: memref<64x4xf32, #tpu.memory_space<vmem>>, %arg1: memref<4x256xf32, #tpu.memory_space<vmem>>, %arg2: memref<64x256xf32, #tpu.memory_space<vmem>>, %arg3: memref<1x256xf32, #tpu.memory_space<vmem>>, %arg4: memref<1x64xf32, #tpu.memory_space<vmem>>, %arg5: memref<1x64xf32, #tpu.memory_space<vmem>>, %arg6: memref<1x64xf32, #tpu.memory_space<vmem>>, %arg7: memref<1x1xf32, #tpu.memory_space<vmem>>, %arg8: memref<64x64xf32, #tpu.memory_space<vmem>>, %arg9: memref<1x64xf32, #tpu.memory_space<vmem>>, %arg10: memref<8x64xf32, #tpu.memory_space<vmem>>, %arg11: memref<8x512xf32, #tpu.memory_space<vmem>>, %arg12: memref<8x8xf32, #tpu.memory_space<vmem>>) attributes {dimension_semantics = [], scalar_prefetch = 0 : i64, scratch_operands = 0 : i64, tpu.core_type = #tpu.core_type<tc>} {
    %c0 = arith.constant 0 : index
    %c0_0 = arith.constant 0 : index
    %0 = vector.load %arg0[%c0, %c0_0] : memref<64x4xf32, #tpu.memory_space<vmem>>, vector<64x4xf32>
    %c0_1 = arith.constant 0 : index
    %c0_2 = arith.constant 0 : index
    %1 = vector.load %arg1[%c0_1, %c0_2] : memref<4x256xf32, #tpu.memory_space<vmem>>, vector<4x256xf32>
    %cst = arith.constant dense<0.000000e+00> : vector<64x256xf32>
    %2 = tpu.matmul %0, %1, %cst {dimension_numbers = #tpu.dot_dimension_numbers<[1], [0], [0], [1], [0, 0, 1, 1], [], []>} : vector<64x4xf32>, vector<4x256xf32>, vector<64x256xf32> -> vector<64x256xf32>
    %c0_3 = arith.constant 0 : index
    %c0_4 = arith.constant 0 : index
    %3 = vector.load %arg3[%c0_3, %c0_4] : memref<1x256xf32, #tpu.memory_space<vmem>>, vector<1x256xf32>
    %4 = vector.broadcast %3 : vector<1x256xf32> to vector<64x256xf32>
    %5 = arith.addf %2, %4 : vector<64x256xf32>
    %c0_5 = arith.constant 0 : index
    %c0_6 = arith.constant 0 : index
    %6 = vector.load %arg2[%c0_5, %c0_6] : memref<64x256xf32, #tpu.memory_space<vmem>>, vector<64x256xf32>
    %cst_7 = arith.constant 0.000000e+00 : f32
    %7 = vector.broadcast %cst_7 : f32 to vector<8x64xf32>
    %cst_8 = arith.constant 0.000000e+00 : f32
    %8 = vector.broadcast %cst_8 : f32 to vector<8x64xf32>
    %cst_9 = arith.constant dense<0.000000e+00> : vector<8x256xf32>
    %9 = tpu.matmul %7, %6, %cst_9 {dimension_numbers = #tpu.dot_dimension_numbers<[1], [0], [0], [1], [0, 0, 1, 1], [], []>} : vector<8x64xf32>, vector<64x256xf32>, vector<8x256xf32> -> vector<8x256xf32>
    %10 = vector.extract_strided_slice %5 {offsets = [0, 0], sizes = [8, 256], strides = [1, 1]} : vector<64x256xf32> to vector<8x256xf32>
    %11 = arith.addf %9, %10 : vector<8x256xf32>
    %12 = arith.negf %11 : vector<8x256xf32>
    %13 = math.exp %12 : vector<8x256xf32>
    %cst_10 = arith.constant 1.000000e+00 : f32
    %14 = vector.broadcast %cst_10 : f32 to vector<8x256xf32>
    %15 = arith.addf %14, %13 : vector<8x256xf32>
    %16 = arith.divf %14, %15 : vector<8x256xf32>
    %17 = math.tanh %11 : vector<8x256xf32>
    %18 = vector.extract_strided_slice %16 {offsets = [0, 0], sizes = [8, 64], strides = [1, 1]} : vector<8x256xf32> to vector<8x64xf32>
    %19 = vector.extract_strided_slice %16 {offsets = [0, 64], sizes = [8, 64], strides = [1, 1]} : vector<8x256xf32> to vector<8x64xf32>
    %20 = vector.extract_strided_slice %16 {offsets = [0, 128], sizes = [8, 64], strides = [1, 1]} : vector<8x256xf32> to vector<8x64xf32>
    %21 = vector.extract_strided_slice %17 {offsets = [0, 192], sizes = [8, 64], strides = [1, 1]} : vector<8x256xf32> to vector<8x64xf32>
    %22 = arith.mulf %19, %8 : vector<8x64xf32>
    %23 = arith.mulf %18, %21 : vector<8x64xf32>
    %24 = arith.addf %22, %23 : vector<8x64xf32>
    %25 = math.tanh %24 : vector<8x64xf32>
    %26 = arith.mulf %20, %25 : vector<8x64xf32>
    %cst_11 = arith.constant dense<0.000000e+00> : vector<8x256xf32>
    %27 = tpu.matmul %26, %6, %cst_11 {dimension_numbers = #tpu.dot_dimension_numbers<[1], [0], [0], [1], [0, 0, 1, 1], [], []>} : vector<8x64xf32>, vector<64x256xf32>, vector<8x256xf32> -> vector<8x256xf32>
    %28 = vector.extract_strided_slice %5 {offsets = [8, 0], sizes = [8, 256], strides = [1, 1]} : vector<64x256xf32> to vector<8x256xf32>
    %29 = arith.addf %27, %28 : vector<8x256xf32>
    %30 = arith.negf %29 : vector<8x256xf32>
    %31 = math.exp %30 : vector<8x256xf32>
    %cst_12 = arith.constant 1.000000e+00 : f32
    %32 = vector.broadcast %cst_12 : f32 to vector<8x256xf32>
    %33 = arith.addf %32, %31 : vector<8x256xf32>
    %34 = arith.divf %32, %33 : vector<8x256xf32>
    %35 = math.tanh %29 : vector<8x256xf32>
    %36 = vector.extract_strided_slice %34 {offsets = [0, 0], sizes = [8, 64], strides = [1, 1]} : vector<8x256xf32> to vector<8x64xf32>
    %37 = vector.extract_strided_slice %34 {offsets = [0, 64], sizes = [8, 64], strides = [1, 1]} : vector<8x256xf32> to vector<8x64xf32>
    %38 = vector.extract_strided_slice %34 {offsets = [0, 128], sizes = [8, 64], strides = [1, 1]} : vector<8x256xf32> to vector<8x64xf32>
    %39 = vector.extract_strided_slice %35 {offsets = [0, 192], sizes = [8, 64], strides = [1, 1]} : vector<8x256xf32> to vector<8x64xf32>
    %40 = arith.mulf %37, %24 : vector<8x64xf32>
    %41 = arith.mulf %36, %39 : vector<8x64xf32>
    %42 = arith.addf %40, %41 : vector<8x64xf32>
    %43 = math.tanh %42 : vector<8x64xf32>
    %44 = arith.mulf %38, %43 : vector<8x64xf32>
    %cst_13 = arith.constant dense<0.000000e+00> : vector<8x256xf32>
    %45 = tpu.matmul %44, %6, %cst_13 {dimension_numbers = #tpu.dot_dimension_numbers<[1], [0], [0], [1], [0, 0, 1, 1], [], []>} : vector<8x64xf32>, vector<64x256xf32>, vector<8x256xf32> -> vector<8x256xf32>
    %46 = vector.extract_strided_slice %5 {offsets = [16, 0], sizes = [8, 256], strides = [1, 1]} : vector<64x256xf32> to vector<8x256xf32>
    %47 = arith.addf %45, %46 : vector<8x256xf32>
    %48 = arith.negf %47 : vector<8x256xf32>
    %49 = math.exp %48 : vector<8x256xf32>
    %cst_14 = arith.constant 1.000000e+00 : f32
    %50 = vector.broadcast %cst_14 : f32 to vector<8x256xf32>
    %51 = arith.addf %50, %49 : vector<8x256xf32>
    %52 = arith.divf %50, %51 : vector<8x256xf32>
    %53 = math.tanh %47 : vector<8x256xf32>
    %54 = vector.extract_strided_slice %52 {offsets = [0, 0], sizes = [8, 64], strides = [1, 1]} : vector<8x256xf32> to vector<8x64xf32>
    %55 = vector.extract_strided_slice %52 {offsets = [0, 64], sizes = [8, 64], strides = [1, 1]} : vector<8x256xf32> to vector<8x64xf32>
    %56 = vector.extract_strided_slice %52 {offsets = [0, 128], sizes = [8, 64], strides = [1, 1]} : vector<8x256xf32> to vector<8x64xf32>
    %57 = vector.extract_strided_slice %53 {offsets = [0, 192], sizes = [8, 64], strides = [1, 1]} : vector<8x256xf32> to vector<8x64xf32>
    %58 = arith.mulf %55, %42 : vector<8x64xf32>
    %59 = arith.mulf %54, %57 : vector<8x64xf32>
    %60 = arith.addf %58, %59 : vector<8x64xf32>
    %61 = math.tanh %60 : vector<8x64xf32>
    %62 = arith.mulf %56, %61 : vector<8x64xf32>
    %cst_15 = arith.constant dense<0.000000e+00> : vector<8x256xf32>
    %63 = tpu.matmul %62, %6, %cst_15 {dimension_numbers = #tpu.dot_dimension_numbers<[1], [0], [0], [1], [0, 0, 1, 1], [], []>} : vector<8x64xf32>, vector<64x256xf32>, vector<8x256xf32> -> vector<8x256xf32>
    %64 = vector.extract_strided_slice %5 {offsets = [24, 0], sizes = [8, 256], strides = [1, 1]} : vector<64x256xf32> to vector<8x256xf32>
    %65 = arith.addf %63, %64 : vector<8x256xf32>
    %66 = arith.negf %65 : vector<8x256xf32>
    %67 = math.exp %66 : vector<8x256xf32>
    %cst_16 = arith.constant 1.000000e+00 : f32
    %68 = vector.broadcast %cst_16 : f32 to vector<8x256xf32>
    %69 = arith.addf %68, %67 : vector<8x256xf32>
    %70 = arith.divf %68, %69 : vector<8x256xf32>
    %71 = math.tanh %65 : vector<8x256xf32>
    %72 = vector.extract_strided_slice %70 {offsets = [0, 0], sizes = [8, 64], strides = [1, 1]} : vector<8x256xf32> to vector<8x64xf32>
    %73 = vector.extract_strided_slice %70 {offsets = [0, 64], sizes = [8, 64], strides = [1, 1]} : vector<8x256xf32> to vector<8x64xf32>
    %74 = vector.extract_strided_slice %70 {offsets = [0, 128], sizes = [8, 64], strides = [1, 1]} : vector<8x256xf32> to vector<8x64xf32>
    %75 = vector.extract_strided_slice %71 {offsets = [0, 192], sizes = [8, 64], strides = [1, 1]} : vector<8x256xf32> to vector<8x64xf32>
    %76 = arith.mulf %73, %60 : vector<8x64xf32>
    %77 = arith.mulf %72, %75 : vector<8x64xf32>
    %78 = arith.addf %76, %77 : vector<8x64xf32>
    %79 = math.tanh %78 : vector<8x64xf32>
    %80 = arith.mulf %74, %79 : vector<8x64xf32>
    %cst_17 = arith.constant dense<0.000000e+00> : vector<8x256xf32>
    %81 = tpu.matmul %80, %6, %cst_17 {dimension_numbers = #tpu.dot_dimension_numbers<[1], [0], [0], [1], [0, 0, 1, 1], [], []>} : vector<8x64xf32>, vector<64x256xf32>, vector<8x256xf32> -> vector<8x256xf32>
    %82 = vector.extract_strided_slice %5 {offsets = [32, 0], sizes = [8, 256], strides = [1, 1]} : vector<64x256xf32> to vector<8x256xf32>
    %83 = arith.addf %81, %82 : vector<8x256xf32>
    %84 = arith.negf %83 : vector<8x256xf32>
    %85 = math.exp %84 : vector<8x256xf32>
    %cst_18 = arith.constant 1.000000e+00 : f32
    %86 = vector.broadcast %cst_18 : f32 to vector<8x256xf32>
    %87 = arith.addf %86, %85 : vector<8x256xf32>
    %88 = arith.divf %86, %87 : vector<8x256xf32>
    %89 = math.tanh %83 : vector<8x256xf32>
    %90 = vector.extract_strided_slice %88 {offsets = [0, 0], sizes = [8, 64], strides = [1, 1]} : vector<8x256xf32> to vector<8x64xf32>
    %91 = vector.extract_strided_slice %88 {offsets = [0, 64], sizes = [8, 64], strides = [1, 1]} : vector<8x256xf32> to vector<8x64xf32>
    %92 = vector.extract_strided_slice %88 {offsets = [0, 128], sizes = [8, 64], strides = [1, 1]} : vector<8x256xf32> to vector<8x64xf32>
    %93 = vector.extract_strided_slice %89 {offsets = [0, 192], sizes = [8, 64], strides = [1, 1]} : vector<8x256xf32> to vector<8x64xf32>
    %94 = arith.mulf %91, %78 : vector<8x64xf32>
    %95 = arith.mulf %90, %93 : vector<8x64xf32>
    %96 = arith.addf %94, %95 : vector<8x64xf32>
    %97 = math.tanh %96 : vector<8x64xf32>
    %98 = arith.mulf %92, %97 : vector<8x64xf32>
    %cst_19 = arith.constant dense<0.000000e+00> : vector<8x256xf32>
    %99 = tpu.matmul %98, %6, %cst_19 {dimension_numbers = #tpu.dot_dimension_numbers<[1], [0], [0], [1], [0, 0, 1, 1], [], []>} : vector<8x64xf32>, vector<64x256xf32>, vector<8x256xf32> -> vector<8x256xf32>
    %100 = vector.extract_strided_slice %5 {offsets = [40, 0], sizes = [8, 256], strides = [1, 1]} : vector<64x256xf32> to vector<8x256xf32>
    %101 = arith.addf %99, %100 : vector<8x256xf32>
    %102 = arith.negf %101 : vector<8x256xf32>
    %103 = math.exp %102 : vector<8x256xf32>
    %cst_20 = arith.constant 1.000000e+00 : f32
    %104 = vector.broadcast %cst_20 : f32 to vector<8x256xf32>
    %105 = arith.addf %104, %103 : vector<8x256xf32>
    %106 = arith.divf %104, %105 : vector<8x256xf32>
    %107 = math.tanh %101 : vector<8x256xf32>
    %108 = vector.extract_strided_slice %106 {offsets = [0, 0], sizes = [8, 64], strides = [1, 1]} : vector<8x256xf32> to vector<8x64xf32>
    %109 = vector.extract_strided_slice %106 {offsets = [0, 64], sizes = [8, 64], strides = [1, 1]} : vector<8x256xf32> to vector<8x64xf32>
    %110 = vector.extract_strided_slice %106 {offsets = [0, 128], sizes = [8, 64], strides = [1, 1]} : vector<8x256xf32> to vector<8x64xf32>
    %111 = vector.extract_strided_slice %107 {offsets = [0, 192], sizes = [8, 64], strides = [1, 1]} : vector<8x256xf32> to vector<8x64xf32>
    %112 = arith.mulf %109, %96 : vector<8x64xf32>
    %113 = arith.mulf %108, %111 : vector<8x64xf32>
    %114 = arith.addf %112, %113 : vector<8x64xf32>
    %115 = math.tanh %114 : vector<8x64xf32>
    %116 = arith.mulf %110, %115 : vector<8x64xf32>
    %cst_21 = arith.constant dense<0.000000e+00> : vector<8x256xf32>
    %117 = tpu.matmul %116, %6, %cst_21 {dimension_numbers = #tpu.dot_dimension_numbers<[1], [0], [0], [1], [0, 0, 1, 1], [], []>} : vector<8x64xf32>, vector<64x256xf32>, vector<8x256xf32> -> vector<8x256xf32>
    %118 = vector.extract_strided_slice %5 {offsets = [48, 0], sizes = [8, 256], strides = [1, 1]} : vector<64x256xf32> to vector<8x256xf32>
    %119 = arith.addf %117, %118 : vector<8x256xf32>
    %120 = arith.negf %119 : vector<8x256xf32>
    %121 = math.exp %120 : vector<8x256xf32>
    %cst_22 = arith.constant 1.000000e+00 : f32
    %122 = vector.broadcast %cst_22 : f32 to vector<8x256xf32>
    %123 = arith.addf %122, %121 : vector<8x256xf32>
    %124 = arith.divf %122, %123 : vector<8x256xf32>
    %125 = math.tanh %119 : vector<8x256xf32>
    %126 = vector.extract_strided_slice %124 {offsets = [0, 0], sizes = [8, 64], strides = [1, 1]} : vector<8x256xf32> to vector<8x64xf32>
    %127 = vector.extract_strided_slice %124 {offsets = [0, 64], sizes = [8, 64], strides = [1, 1]} : vector<8x256xf32> to vector<8x64xf32>
    %128 = vector.extract_strided_slice %124 {offsets = [0, 128], sizes = [8, 64], strides = [1, 1]} : vector<8x256xf32> to vector<8x64xf32>
    %129 = vector.extract_strided_slice %125 {offsets = [0, 192], sizes = [8, 64], strides = [1, 1]} : vector<8x256xf32> to vector<8x64xf32>
    %130 = arith.mulf %127, %114 : vector<8x64xf32>
    %131 = arith.mulf %126, %129 : vector<8x64xf32>
    %132 = arith.addf %130, %131 : vector<8x64xf32>
    %133 = math.tanh %132 : vector<8x64xf32>
    %134 = arith.mulf %128, %133 : vector<8x64xf32>
    %cst_23 = arith.constant dense<0.000000e+00> : vector<8x256xf32>
    %135 = tpu.matmul %134, %6, %cst_23 {dimension_numbers = #tpu.dot_dimension_numbers<[1], [0], [0], [1], [0, 0, 1, 1], [], []>} : vector<8x64xf32>, vector<64x256xf32>, vector<8x256xf32> -> vector<8x256xf32>
    %136 = vector.extract_strided_slice %5 {offsets = [56, 0], sizes = [8, 256], strides = [1, 1]} : vector<64x256xf32> to vector<8x256xf32>
    %137 = arith.addf %135, %136 : vector<8x256xf32>
    %138 = arith.negf %137 : vector<8x256xf32>
    %139 = math.exp %138 : vector<8x256xf32>
    %cst_24 = arith.constant 1.000000e+00 : f32
    %140 = vector.broadcast %cst_24 : f32 to vector<8x256xf32>
    %141 = arith.addf %140, %139 : vector<8x256xf32>
    %142 = arith.divf %140, %141 : vector<8x256xf32>
    %143 = math.tanh %137 : vector<8x256xf32>
    %144 = vector.extract_strided_slice %142 {offsets = [0, 0], sizes = [8, 64], strides = [1, 1]} : vector<8x256xf32> to vector<8x64xf32>
    %145 = vector.extract_strided_slice %142 {offsets = [0, 64], sizes = [8, 64], strides = [1, 1]} : vector<8x256xf32> to vector<8x64xf32>
    %146 = vector.extract_strided_slice %142 {offsets = [0, 128], sizes = [8, 64], strides = [1, 1]} : vector<8x256xf32> to vector<8x64xf32>
    %147 = vector.extract_strided_slice %143 {offsets = [0, 192], sizes = [8, 64], strides = [1, 1]} : vector<8x256xf32> to vector<8x64xf32>
    %148 = arith.mulf %145, %132 : vector<8x64xf32>
    %149 = arith.mulf %144, %147 : vector<8x64xf32>
    %150 = arith.addf %148, %149 : vector<8x64xf32>
    %151 = math.tanh %150 : vector<8x64xf32>
    %152 = arith.mulf %146, %151 : vector<8x64xf32>
    %153 = vector.shape_cast %26 : vector<8x64xf32> to vector<1x8x64xf32>
    %154 = vector.shape_cast %44 : vector<8x64xf32> to vector<1x8x64xf32>
    %155 = vector.shape_cast %62 : vector<8x64xf32> to vector<1x8x64xf32>
    %156 = vector.shape_cast %80 : vector<8x64xf32> to vector<1x8x64xf32>
    %157 = vector.shape_cast %98 : vector<8x64xf32> to vector<1x8x64xf32>
    %158 = vector.shape_cast %116 : vector<8x64xf32> to vector<1x8x64xf32>
    %159 = vector.shape_cast %134 : vector<8x64xf32> to vector<1x8x64xf32>
    %160 = vector.shape_cast %152 : vector<8x64xf32> to vector<1x8x64xf32>
    %161 = tpu.concatenate %153, %154, %155, %156, %157, %158, %159, %160 in 0 : vector<1x8x64xf32>, vector<1x8x64xf32>, vector<1x8x64xf32>, vector<1x8x64xf32>, vector<1x8x64xf32>, vector<1x8x64xf32>, vector<1x8x64xf32>, vector<1x8x64xf32> -> vector<8x8x64xf32>
    %cst_25 = arith.constant dense<0.000000e+00> : vector<8x8xf32>
    %162 = vector.multi_reduction <add>, %161, %cst_25 [2] : vector<8x8x64xf32> to vector<8x8xf32>
    %163 = vector.shape_cast %162 : vector<8x8xf32> to vector<8x8x1xf32>
    %cst_26 = arith.constant 6.400000e+01 : f32
    %164 = vector.broadcast %cst_26 : f32 to vector<8x8x1xf32>
    %165 = arith.divf %163, %164 : vector<8x8x1xf32>
    %166 = vector.broadcast %165 : vector<8x8x1xf32> to vector<8x8x64xf32>
    %167 = arith.subf %161, %166 : vector<8x8x64xf32>
    %168 = arith.mulf %167, %167 : vector<8x8x64xf32>
    %cst_27 = arith.constant dense<0.000000e+00> : vector<8x8xf32>
    %169 = vector.multi_reduction <add>, %168, %cst_27 [2] : vector<8x8x64xf32> to vector<8x8xf32>
    %170 = vector.shape_cast %169 : vector<8x8xf32> to vector<8x8x1xf32>
    %cst_28 = arith.constant 6.400000e+01 : f32
    %171 = vector.broadcast %cst_28 : f32 to vector<8x8x1xf32>
    %172 = arith.divf %170, %171 : vector<8x8x1xf32>
    %173 = vector.broadcast %165 : vector<8x8x1xf32> to vector<8x8x64xf32>
    %174 = arith.subf %161, %173 : vector<8x8x64xf32>
    %cst_29 = arith.constant 9.99999974E-6 : f32
    %175 = vector.broadcast %cst_29 : f32 to vector<8x8x1xf32>
    %176 = arith.addf %172, %175 : vector<8x8x1xf32>
    %177 = math.rsqrt %176 : vector<8x8x1xf32>
    %178 = vector.broadcast %177 : vector<8x8x1xf32> to vector<8x8x64xf32>
    %179 = arith.mulf %174, %178 : vector<8x8x64xf32>
    %c0_30 = arith.constant 0 : index
    %c0_31 = arith.constant 0 : index
    %180 = vector.load %arg4[%c0_30, %c0_31] : memref<1x64xf32, #tpu.memory_space<vmem>>, vector<1x64xf32>
    %181 = vector.shape_cast %180 : vector<1x64xf32> to vector<1x1x64xf32>
    %182 = vector.broadcast %181 : vector<1x1x64xf32> to vector<8x8x64xf32>
    %183 = arith.mulf %179, %182 : vector<8x8x64xf32>
    %c0_32 = arith.constant 0 : index
    %c0_33 = arith.constant 0 : index
    %184 = vector.load %arg5[%c0_32, %c0_33] : memref<1x64xf32, #tpu.memory_space<vmem>>, vector<1x64xf32>
    %185 = vector.shape_cast %184 : vector<1x64xf32> to vector<1x1x64xf32>
    %186 = vector.broadcast %185 : vector<1x1x64xf32> to vector<8x8x64xf32>
    %187 = arith.addf %183, %186 : vector<8x8x64xf32>
    %188 = vector.shape_cast %187 : vector<8x8x64xf32> to vector<8x512xf32>
    %c0_34 = arith.constant 0 : index
    %c0_35 = arith.constant 0 : index
    %189 = vector.load %arg11[%c0_34, %c0_35] : memref<8x512xf32, #tpu.memory_space<vmem>>, vector<8x512xf32>
    tpu.vector_store %arg11[%c0_34, %c0_35], %188 {strides = array<i32>} : memref<8x512xf32, #tpu.memory_space<vmem>>, vector<8x512xf32>,
    %c0_36 = arith.constant 0 : index
    %c0_37 = arith.constant 0 : index
    %190 = vector.load %arg6[%c0_36, %c0_37] : memref<1x64xf32, #tpu.memory_space<vmem>>, vector<1x64xf32>
    %191 = vector.shape_cast %190 : vector<1x64xf32> to vector<1x1x64xf32>
    %192 = vector.broadcast %191 : vector<1x1x64xf32> to vector<8x8x64xf32>
    %193 = arith.mulf %187, %192 : vector<8x8x64xf32>
    %cst_38 = arith.constant dense<0.000000e+00> : vector<8x8xf32>
    %194 = vector.multi_reduction <add>, %193, %cst_38 [2] : vector<8x8x64xf32> to vector<8x8xf32>
    %195 = vector.shape_cast %194 : vector<8x8xf32> to vector<8x8x1xf32>
    %c0_39 = arith.constant 0 : index
    %c0_40 = arith.constant 0 : index
    %196 = vector.load %arg7[%c0_39, %c0_40] : memref<1x1xf32, #tpu.memory_space<vmem>>, vector<1x1xf32>
    %197 = vector.shape_cast %196 : vector<1x1xf32> to vector<1x1x1xf32>
    %198 = vector.broadcast %197 : vector<1x1x1xf32> to vector<8x8x1xf32>
    %199 = arith.addf %195, %198 : vector<8x8x1xf32>
    %cst_41 = arith.constant dense<0xFF800000> : vector<8x1xf32>
    %200 = vector.multi_reduction <maximumf>, %199, %cst_41 [0] : vector<8x8x1xf32> to vector<8x1xf32>
    %201 = vector.shape_cast %200 : vector<8x1xf32> to vector<1x8x1xf32>
    %202 = vector.broadcast %201 : vector<1x8x1xf32> to vector<8x8x1xf32>
    %203 = arith.subf %199, %202 : vector<8x8x1xf32>
    %204 = math.exp %203 : vector<8x8x1xf32>
    %cst_42 = arith.constant dense<0.000000e+00> : vector<8x1xf32>
    %205 = vector.multi_reduction <add>, %204, %cst_42 [0] : vector<8x8x1xf32> to vector<8x1xf32>
    %206 = vector.shape_cast %205 : vector<8x1xf32> to vector<1x8x1xf32>
    %207 = vector.broadcast %206 : vector<1x8x1xf32> to vector<8x8x1xf32>
    %208 = arith.divf %204, %207 : vector<8x8x1xf32>
    %209 = vector.broadcast %208 : vector<8x8x1xf32> to vector<8x8x64xf32>
    %210 = arith.mulf %187, %209 : vector<8x8x64xf32>
    %cst_43 = arith.constant dense<0.000000e+00> : vector<8x64xf32>
    %211 = vector.multi_reduction <add>, %210, %cst_43 [0] : vector<8x8x64xf32> to vector<8x64xf32>
    %212 = vector.shape_cast %208 : vector<8x8x1xf32> to vector<8x8xf32>
    %213 = tpu.transpose %212, [1, 0] : vector<8x8xf32> -> vector<8x8xf32>
    %c0_44 = arith.constant 0 : index
    %c0_45 = arith.constant 0 : index
    %214 = vector.load %arg12[%c0_44, %c0_45] : memref<8x8xf32, #tpu.memory_space<vmem>>, vector<8x8xf32>
    tpu.vector_store %arg12[%c0_44, %c0_45], %213 {strides = array<i32>} : memref<8x8xf32, #tpu.memory_space<vmem>>, vector<8x8xf32>,
    %c0_46 = arith.constant 0 : index
    %c0_47 = arith.constant 0 : index
    %215 = vector.load %arg8[%c0_46, %c0_47] : memref<64x64xf32, #tpu.memory_space<vmem>>, vector<64x64xf32>
    %cst_48 = arith.constant dense<0.000000e+00> : vector<8x64xf32>
    %216 = tpu.matmul %211, %215, %cst_48 {dimension_numbers = #tpu.dot_dimension_numbers<[1], [0], [0], [1], [0, 0, 1, 1], [], []>} : vector<8x64xf32>, vector<64x64xf32>, vector<8x64xf32> -> vector<8x64xf32>
    %c0_49 = arith.constant 0 : index
    %c0_50 = arith.constant 0 : index
    %217 = vector.load %arg9[%c0_49, %c0_50] : memref<1x64xf32, #tpu.memory_space<vmem>>, vector<1x64xf32>
    %218 = vector.broadcast %217 : vector<1x64xf32> to vector<8x64xf32>
    %219 = arith.addf %216, %218 : vector<8x64xf32>
    %c0_51 = arith.constant 0 : index
    %c0_52 = arith.constant 0 : index
    %220 = vector.load %arg10[%c0_51, %c0_52] : memref<8x64xf32, #tpu.memory_space<vmem>>, vector<8x64xf32>
    tpu.vector_store %arg10[%c0_51, %c0_52], %219 {strides = array<i32>} : memref<8x64xf32, #tpu.memory_space<vmem>>, vector<8x64xf32>,
    return
  }
}

</mosaic_0001>

<llo_original>
// kernel: encoder_vae_forward.1
$region0: #{encoder_vae_forward.1}
  #allocation0 [shape = 'u32[]', space=smem, size = 0x4, offset = 0x4, fixed_abs, tag = 'smem constant byte address 0x4 - core index']
  #allocation1 [shape = 'u32[144,128]{1,0:T(1,128)}', space=vmem, size = 0x12000, scoped, tag = 'internal scratch']
  #allocation2 [shape = 'f32[1,1]{1,0:T(1,128)S(1)}', space=vmem, size = 0x200, scoped, tag = 'scoped memory for encoder_vae_forward.1']
  %s0 = inlined_call_operand.vmem [shape: f32[64,4], index: 0, kind: input, shape index: {}]
  %s1 = inlined_call_operand.vmem [shape: f32[4,256], index: 1, kind: input, shape index: {}]
  %s2 = inlined_call_operand.vmem [shape: f32[64,256], index: 2, kind: input, shape index: {}]
  %s3 = inlined_call_operand.vmem [shape: f32[1,256], index: 3, kind: input, shape index: {}]
  %s4 = inlined_call_operand.vmem [shape: f32[1,64], index: 4, kind: input, shape index: {}]
  %s5 = inlined_call_operand.vmem [shape: f32[1,64], index: 5, kind: input, shape index: {}]
  %s6 = inlined_call_operand.vmem [shape: f32[1,64], index: 6, kind: input, shape index: {}]
  %s7 = inlined_call_operand.<no memory space> [shape: f32[1,1], index: 7, kind: input, shape index: {}]
  %s8 = inlined_call_operand.vmem [shape: f32[64,64], index: 8, kind: input, shape index: {}]
  %s9 = inlined_call_operand.vmem [shape: f32[1,64], index: 9, kind: input, shape index: {}]
  %s10 = inlined_call_operand.vmem [shape: f32[8,64], index: 10, kind: output, shape index: {0}]
  %s11 = inlined_call_operand.vmem [shape: f32[8,512], index: 11, kind: output, shape index: {1}]
  %s12 = inlined_call_operand.vmem [shape: f32[8,8], index: 12, kind: output, shape index: {2}]
  %13 = xla_tuple %s10, %s11, %s12
  %s14 = sld [smem:[#allocation0]]
  $region66: #{encoder_vae_forward.1} parent=0
    _
  %s16 = ssub.s32 1, %s14
  %s17 = scalar_select 0, %s16, %s14
  %v18 = vstv %s7
  %19 = vst [vmem:[#allocation2] sm:$0x1] %v18
  // Predicated region
  $region2: #{encoder_vae_forward.1} parent=0 // pred_check
    _
  $region3: #{encoder_vae_forward.1} parent=0 // pred_check_branch
    %21 = sbr.rel (0) target = $region5
  $region4: #{encoder_vae_forward.1} parent=0 // pred_region
    _
  $region5: #{encoder_vae_forward.1} parent=0 // pred_fallthru
    _
  // Predicated region
  $region6: #{encoder_vae_forward.1} parent=0 // pred_check
    _
  $region7: #{encoder_vae_forward.1} parent=0 // pred_check_branch
    %23 = sbr.rel (0) target = $region9
  $region8: #{encoder_vae_forward.1} parent=0 // pred_region
    _
  $region9: #{encoder_vae_forward.1} parent=0 // pred_fallthru
    _
  // Predicated region
  $region10: #{encoder_vae_forward.1} parent=0 // pred_check
    _
  $region11: #{encoder_vae_forward.1} parent=0 // pred_check_branch
    %25 = sbr.rel (0) target = $region13
  $region12: #{encoder_vae_forward.1} parent=0 // pred_region
    _
  $region13: #{encoder_vae_forward.1} parent=0 // pred_fallthru
    _
  // Predicated region
  $region14: #{encoder_vae_forward.1} parent=0 // pred_check
    _
  $region15: #{encoder_vae_forward.1} parent=0 // pred_check_branch
    %27 = sbr.rel (0) target = $region17
  $region16: #{encoder_vae_forward.1} parent=0 // pred_region
    _
  $region17: #{encoder_vae_forward.1} parent=0 // pred_fallthru
    _
  // Predicated region
  $region18: #{encoder_vae_forward.1} parent=0 // pred_check
    _
  $region19: #{encoder_vae_forward.1} parent=0 // pred_check_branch
    %29 = sbr.rel (0) target = $region21
  $region20: #{encoder_vae_forward.1} parent=0 // pred_region
    _
  $region21: #{encoder_vae_forward.1} parent=0 // pred_fallthru
    _
  // Predicated region
  $region22: #{encoder_vae_forward.1} parent=0 // pred_check
    _
  $region23: #{encoder_vae_forward.1} parent=0 // pred_check_branch
    %31 = sbr.rel (0) target = $region25
  $region24: #{encoder_vae_forward.1} parent=0 // pred_region
    _
  $region25: #{encoder_vae_forward.1} parent=0 // pred_fallthru
    _
  // Predicated region
  $region26: #{encoder_vae_forward.1} parent=0 // pred_check
    _
  $region27: #{encoder_vae_forward.1} parent=0 // pred_check_branch
    %33 = sbr.rel (0) target = $region29
  $region28: #{encoder_vae_forward.1} parent=0 // pred_region
    _
  $region29: #{encoder_vae_forward.1} parent=0 // pred_fallthru
    _
  // Predicated region
  $region30: #{encoder_vae_forward.1} parent=0 // pred_check
    _
  $region31: #{encoder_vae_forward.1} parent=0 // pred_check_branch
    %35 = sbr.rel (0) target = $region33
  $region32: #{encoder_vae_forward.1} parent=0 // pred_region
    _
  $region33: #{encoder_vae_forward.1} parent=0 // pred_fallthru
    _
  // Predicated region
  $region34: #{encoder_vae_forward.1} parent=0 // pred_check
    _
  $region35: #{encoder_vae_forward.1} parent=0 // pred_check_branch
    %37 = sbr.rel (0) target = $region37
  $region36: #{encoder_vae_forward.1} parent=0 // pred_region
    _
  $region37: #{encoder_vae_forward.1} parent=0 // pred_fallthru
    _
  // Predicated region
  $region38: #{encoder_vae_forward.1} parent=0 // pred_check
    _
  $region39: #{encoder_vae_forward.1} parent=0 // pred_check_branch
    %39 = sbr.rel (0) target = $region41
  $region40: #{encoder_vae_forward.1} parent=0 // pred_region
    _
  $region41: #{encoder_vae_forward.1} parent=0 // pred_fallthru
    _
  %v40 = vld [vmem:[%s0] sm:$0xff]
  %v41 = vld [vmem:[%s0 + $0x8] sm:$0xff]
  %v42 = vld [vmem:[%s0 + $0x10] sm:$0xff]
  %v43 = vld [vmem:[%s0 + $0x18] sm:$0xff]
  %v44 = vld [vmem:[%s0 + $0x20] sm:$0xff]
  %v45 = vld [vmem:[%s0 + $0x28] sm:$0xff]
  %v46 = vld [vmem:[%s0 + $0x30] sm:$0xff]
  %v47 = vld [vmem:[%s0 + $0x38] sm:$0xff]
  %v48 = vld [vmem:[%s1] sm:$0xff]
  %v49 = vld [vmem:[%s3] sm:$0x3]
  %v51 = vlaneseq
  %v52 = vshrl.u32 %v51, 7
  %v53 = vsub.s32 0, %v52
  %v54 = vrot.slane %v49, %v53
  %v55 = vlaneseq
  %v56 = vshrl.u32 %v55, 7
  %v57 = vsub.s32 1, %v56
  %v58 = vrot.slane %v49, %v57
  %v62 = vcombine.high %v48, %v48
  %vm63 = vcmask 31744
  %v65 = vsel %vm63, %v40, 0
  %v68 = vsel %vm63, %v41, 0
  %v71 = vsel %vm63, %v42, 0
  %v74 = vsel %vm63, %v43, 0
  %v77 = vsel %vm63, %v44, 0
  %v80 = vsel %vm63, %v45, 0
  %v83 = vsel %vm63, %v46, 0
  %v86 = vsel %vm63, %v47, 0
  %vm88 = vcmask 1043456
  %v89 = vsel %vm88, %v48, 0
  %v91 = vsel %vm88, %v62, 0
  %93 = vmatprep.subr.mxu0 %v91
  %94 = vmatpush1.msra.mxu0 %v89
  %95 = vmatprep.subr.mxu0 0.0
  %96 = vmatpush1.msra.mxu0 0.0
  %97 = vmatprep.subr.mxu0 0.0
  %98 = vmatpush1.msra.mxu0 0.0
  %99 = vmatprep.subr.mxu0 0.0
  %100 = vmatpush1.msra.mxu0 0.0
  %101 = vmatprep.subr.mxu0 0.0
  %102 = vmatpush1.msra.mxu0 0.0
  %103 = vmatprep.subr.mxu0 0.0
  %104 = vmatpush1.msra.mxu0 0.0
  %105 = vmatprep.subr.mxu0 0.0
  %106 = vmatpush1.msra.mxu0 0.0
  %107 = vmatprep.subr.mxu0 0.0
  %108 = vmatpush1.msra.mxu0 0.0
  %109 = vmatprep.subr.mxu0 0.0
  %110 = vmatpush1.msra.mxu0 0.0
  %111 = vmatprep.subr.mxu0 0.0
  %112 = vmatpush1.msra.mxu0 0.0
  %113 = vmatprep.subr.mxu0 0.0
  %114 = vmatpush1.msra.mxu0 0.0
  %115 = vmatprep.subr.mxu0 0.0
  %116 = vmatpush1.msra.mxu0 0.0
  %117 = vmatprep.subr.mxu0 0.0
  %118 = vmatpush1.msra.mxu0 0.0
  %119 = vmatprep.subr.mxu0 0.0
  %120 = vmatpush1.msra.mxu0 0.0
  %121 = vmatprep.subr.mxu0 0.0
  %122 = vmatpush1.msra.mxu0 0.0
  %123 = vmatprep.subr.mxu0 0.0
  %124 = vmatpush1.msra.mxu0 0.0
  %125 = vmatprep.subr.mxu0 0.0
  %126 = vmatpush1.msra.mxu0 0.0
  %127 = vmatprep.subr.mxu0 0.0
  %128 = vmatpush1.msra.mxu0 0.0
  %129 = vmatprep.subr.mxu0 0.0
  %130 = vmatpush1.msra.mxu0 0.0
  %131 = vmatprep.subr.mxu0 0.0
  %132 = vmatpush1.msra.mxu0 0.0
  %133 = vmatprep.subr.mxu0 0.0
  %134 = vmatpush1.msra.mxu0 0.0
  %135 = vmatprep.subr.mxu0 0.0
  %136 = vmatpush1.msra.mxu0 0.0
  %137 = vmatprep.subr.mxu0 0.0
  %138 = vmatpush1.msra.mxu0 0.0
  %139 = vmatprep.subr.mxu0 0.0
  %140 = vmatpush1.msra.mxu0 0.0
  %141 = vmatprep.subr.mxu0 0.0
  %142 = vmatpush1.msra.mxu0 0.0
  %143 = vmatprep.subr.mxu0 0.0
  %144 = vmatpush1.msra.mxu0 0.0
  %145 = vmatprep.subr.mxu0 0.0
  %146 = vmatpush1.msra.mxu0 0.0
  %147 = vmatprep.subr.mxu0 0.0
  %148 = vmatpush1.msra.mxu0 0.0
  %149 = vmatprep.subr.mxu0 0.0
  %150 = vmatpush1.msra.mxu0 0.0
  %151 = vmatprep.subr.mxu0 0.0
  %152 = vmatpush1.msra.mxu0 0.0
  %153 = vmatprep.subr.mxu0 0.0
  %154 = vmatpush1.msra.mxu0 0.0
  %155 = vmatprep.subr.mxu0 0.0
  %156 = vmatpush1.msra.mxu0 0.0
  %157 = vmatprep.mubr.f32.mxu0 0.0
  %158 = vmatmul.mubr.f32.gmra.mrb[0].mxu0 %v65
  %v159 = vpop.f32.mrb[0].mxu0
  %v160 = vadd.f32 %v54, %v159
  %v161 = vpop.f32.mrb[0].mxu0
  %v162 = vadd.f32 %v58, %v161
  %163 = vmatprep.mubr.f32.mxu0 0.0
  %164 = vmatmul.mubr.f32.gmra.mrb[0].mxu0 %v68
  %v165 = vpop.f32.mrb[0].mxu0
  %v166 = vadd.f32 %v54, %v165
  %v167 = vpop.f32.mrb[0].mxu0
  %v168 = vadd.f32 %v58, %v167
  %169 = vmatprep.mubr.f32.mxu0 0.0
  %170 = vmatmul.mubr.f32.gmra.mrb[0].mxu0 %v71
  %v171 = vpop.f32.mrb[0].mxu0
  %v172 = vadd.f32 %v54, %v171
  %v173 = vpop.f32.mrb[0].mxu0
  %v174 = vadd.f32 %v58, %v173
  %175 = vmatprep.mubr.f32.mxu0 0.0
  %176 = vmatmul.mubr.f32.gmra.mrb[0].mxu0 %v74
  %v177 = vpop.f32.mrb[0].mxu0
  %v178 = vadd.f32 %v54, %v177
  %v179 = vpop.f32.mrb[0].mxu0
  %v180 = vadd.f32 %v58, %v179
  %181 = vmatprep.mubr.f32.mxu0 0.0
  %182 = vmatmul.mubr.f32.gmra.mrb[0].mxu0 %v77
  %v183 = vpop.f32.mrb[0].mxu0
  %v184 = vadd.f32 %v54, %v183
  %v185 = vpop.f32.mrb[0].mxu0
  %v186 = vadd.f32 %v58, %v185
  %187 = vmatprep.mubr.f32.mxu0 0.0
  %188 = vmatmul.mubr.f32.gmra.mrb[0].mxu0 %v80
  %v189 = vpop.f32.mrb[0].mxu0
  %v190 = vadd.f32 %v54, %v189
  %v191 = vpop.f32.mrb[0].mxu0
  %v192 = vadd.f32 %v58, %v191
  %193 = vmatprep.mubr.f32.mxu0 0.0
  %194 = vmatmul.mubr.f32.gmra.mrb[0].mxu0 %v83
  %v195 = vpop.f32.mrb[0].mxu0
  %v196 = vadd.f32 %v54, %v195
  %v197 = vpop.f32.mrb[0].mxu0
  %v198 = vadd.f32 %v58, %v197
  %199 = vmatprep.mubr.f32.mxu0 0.0
  %200 = vmatmul.mubr.f32.gmra.mrb[0].mxu0 %v86
  %v201 = vpop.f32.mrb[0].mxu0
  %v202 = vadd.f32 %v54, %v201
  %v203 = vpop.f32.mrb[0].mxu0
  %v204 = vadd.f32 %v58, %v203
  %205 = vdwg.mxu0
  %v206 = vld [vmem:[%s2] sm:$0xff]
  %v207 = vld [vmem:[%s2 + $0x8] sm:$0xff]
  %v208 = vld [vmem:[%s2 + $0x10] sm:$0xff]
  %v209 = vld [vmem:[%s2 + $0x18] sm:$0xff]
  %v210 = vld [vmem:[%s2 + $0x20] sm:$0xff]
  %v211 = vld [vmem:[%s2 + $0x28] sm:$0xff]
  %v212 = vld [vmem:[%s2 + $0x30] sm:$0xff]
  %v213 = vld [vmem:[%s2 + $0x38] sm:$0xff]
  %v214 = vld [vmem:[%s2 + $0x40] sm:$0xff]
  %v215 = vld [vmem:[%s2 + $0x48] sm:$0xff]
  %v216 = vld [vmem:[%s2 + $0x50] sm:$0xff]
  %v217 = vld [vmem:[%s2 + $0x58] sm:$0xff]
  %v218 = vld [vmem:[%s2 + $0x60] sm:$0xff]
  %v219 = vld [vmem:[%s2 + $0x68] sm:$0xff]
  %v220 = vld [vmem:[%s2 + $0x70] sm:$0xff]
  %v221 = vld [vmem:[%s2 + $0x78] sm:$0xff]
  %vm222 = vcmask 523264
  %v224 = vsel %vm222, 0.0, 0
  %226 = vmatprep.subr.mxu0 %v207
  %227 = vmatpush1.msra.mxu0 %v206
  %228 = vmatprep.subr.mxu0 %v209
  %229 = vmatpush1.msra.mxu0 %v208
  %230 = vmatprep.subr.mxu0 %v211
  %231 = vmatpush1.msra.mxu0 %v210
  %232 = vmatprep.subr.mxu0 %v213
  %233 = vmatpush1.msra.mxu0 %v212
  %234 = vmatprep.subr.mxu0 %v215
  %235 = vmatpush1.msra.mxu0 %v214
  %236 = vmatprep.subr.mxu0 %v217
  %237 = vmatpush1.msra.mxu0 %v216
  %238 = vmatprep.subr.mxu0 %v219
  %239 = vmatpush1.msra.mxu0 %v218
  %240 = vmatprep.subr.mxu0 %v221
  %241 = vmatpush1.msra.mxu0 %v220
  %242 = vmatprep.subr.mxu0 0.0
  %243 = vmatpush1.msra.mxu0 0.0
  %244 = vmatprep.subr.mxu0 0.0
  %245 = vmatpush1.msra.mxu0 0.0
  %246 = vmatprep.subr.mxu0 0.0
  %247 = vmatpush1.msra.mxu0 0.0
  %248 = vmatprep.subr.mxu0 0.0
  %249 = vmatpush1.msra.mxu0 0.0
  %250 = vmatprep.subr.mxu0 0.0
  %251 = vmatpush1.msra.mxu0 0.0
  %252 = vmatprep.subr.mxu0 0.0
  %253 = vmatpush1.msra.mxu0 0.0
  %254 = vmatprep.subr.mxu0 0.0
  %255 = vmatpush1.msra.mxu0 0.0
  %256 = vmatprep.subr.mxu0 0.0
  %257 = vmatpush1.msra.mxu0 0.0
  %258 = vmatprep.subr.mxu0 0.0
  %259 = vmatpush1.msra.mxu0 0.0
  %260 = vmatprep.subr.mxu0 0.0
  %261 = vmatpush1.msra.mxu0 0.0
  %262 = vmatprep.subr.mxu0 0.0
  %263 = vmatpush1.msra.mxu0 0.0
  %264 = vmatprep.subr.mxu0 0.0
  %265 = vmatpush1.msra.mxu0 0.0
  %266 = vmatprep.subr.mxu0 0.0
  %267 = vmatpush1.msra.mxu0 0.0
  %268 = vmatprep.subr.mxu0 0.0
  %269 = vmatpush1.msra.mxu0 0.0
  %270 = vmatprep.subr.mxu0 0.0
  %271 = vmatpush1.msra.mxu0 0.0
  %272 = vmatprep.subr.mxu0 0.0
  %273 = vmatpush1.msra.mxu0 0.0
  %274 = vmatprep.subr.mxu0 0.0
  %275 = vmatpush1.msra.mxu0 0.0
  %276 = vmatprep.subr.mxu0 0.0
  %277 = vmatpush1.msra.mxu0 0.0
  %278 = vmatprep.subr.mxu0 0.0
  %279 = vmatpush1.msra.mxu0 0.0
  %280 = vmatprep.subr.mxu0 0.0
  %281 = vmatpush1.msra.mxu0 0.0
  %282 = vmatprep.subr.mxu0 0.0
  %283 = vmatpush1.msra.mxu0 0.0
  %284 = vmatprep.subr.mxu0 0.0
  %285 = vmatpush1.msra.mxu0 0.0
  %286 = vmatprep.subr.mxu0 0.0
  %287 = vmatpush1.msra.mxu0 0.0
  %288 = vmatprep.subr.mxu0 0.0
  %289 = vmatpush1.msra.mxu0 0.0
  %290 = vmatprep.mubr.f32.mxu0 0.0
  %291 = vmatmul.mubr.f32.gmra.mrb[0].mxu0 %v224
  %v292 = vpop.f32.mrb[0].mxu0
  %v293 = vadd.f32 %v160, %v292
  %v294 = vpop.f32.mrb[0].mxu0
  %v295 = vadd.f32 %v162, %v294
  %296 = vdwg.mxu0
  %v297 = vxor.u32 %v293, 2147483648
  %v298 = vxor.u32 %v295, 2147483648
  %v299 = vmul.f32 %v297, 1.442695
  %v300 = vpow.pop %v299
  %v301 = vmul.f32 %v298, 1.442695
  %v302 = vpow.pop %v301
  %v303 = vadd.f32 %v300, 1.0
  %v304 = vadd.f32 %v302, 1.0
  %v305 = vrcp.pop %v303
  %v306 = vmul.f32 1.0, %v305
  %v307 = vrcp.pop %v304
  %v308 = vmul.f32 1.0, %v307
  %v309 = vtanh.pop %v295
  %v310 = vmul.f32 %v306, 0.0
  %312 = vrot.lane.b32.xlu0 %v309, 64
  %v313 = vpop.permute.xlu0 %312
  %v315 = vmul.f32 %v306, %v313
  %317 = vrot.lane.b32.xlu0 %v315, 64
  %v318 = vpop.permute.xlu0 %317
  %v320 = vadd.f32 %v310, %v318
  %v321 = vtanh.pop %v320
  %323 = vrot.lane.b32.xlu0 %v321, 64
  %v324 = vpop.permute.xlu0 %323
  %v326 = vmul.f32 %v308, %v324
  %v328 = vsel %vm222, %v326, 0
  %330 = vmatprep.subr.mxu0 %v207
  %331 = vmatpush1.msra.mxu0 %v206
  %332 = vmatprep.subr.mxu0 %v209
  %333 = vmatpush1.msra.mxu0 %v208
  %334 = vmatprep.subr.mxu0 %v211
  %335 = vmatpush1.msra.mxu0 %v210
  %336 = vmatprep.subr.mxu0 %v213
  %337 = vmatpush1.msra.mxu0 %v212
  %338 = vmatprep.subr.mxu0 %v215
  %339 = vmatpush1.msra.mxu0 %v214
  %340 = vmatprep.subr.mxu0 %v217
  %341 = vmatpush1.msra.mxu0 %v216
  %342 = vmatprep.subr.mxu0 %v219
  %343 = vmatpush1.msra.mxu0 %v218
  %344 = vmatprep.subr.mxu0 %v221
  %345 = vmatpush1.msra.mxu0 %v220
  %346 = vmatprep.subr.mxu0 0.0
  %347 = vmatpush1.msra.mxu0 0.0
  %348 = vmatprep.subr.mxu0 0.0
  %349 = vmatpush1.msra.mxu0 0.0
  %350 = vmatprep.subr.mxu0 0.0
  %351 = vmatpush1.msra.mxu0 0.0
  %352 = vmatprep.subr.mxu0 0.0
  %353 = vmatpush1.msra.mxu0 0.0
  %354 = vmatprep.subr.mxu0 0.0
  %355 = vmatpush1.msra.mxu0 0.0
  %356 = vmatprep.subr.mxu0 0.0
  %357 = vmatpush1.msra.mxu0 0.0
  %358 = vmatprep.subr.mxu0 0.0
  %359 = vmatpush1.msra.mxu0 0.0
  %360 = vmatprep.subr.mxu0 0.0
  %361 = vmatpush1.msra.mxu0 0.0
  %362 = vmatprep.subr.mxu0 0.0
  %363 = vmatpush1.msra.mxu0 0.0
  %364 = vmatprep.subr.mxu0 0.0
  %365 = vmatpush1.msra.mxu0 0.0
  %366 = vmatprep.subr.mxu0 0.0
  %367 = vmatpush1.msra.mxu0 0.0
  %368 = vmatprep.subr.mxu0 0.0
  %369 = vmatpush1.msra.mxu0 0.0
  %370 = vmatprep.subr.mxu0 0.0
  %371 = vmatpush1.msra.mxu0 0.0
  %372 = vmatprep.subr.mxu0 0.0
  %373 = vmatpush1.msra.mxu0 0.0
  %374 = vmatprep.subr.mxu0 0.0
  %375 = vmatpush1.msra.mxu0 0.0
  %376 = vmatprep.subr.mxu0 0.0
  %377 = vmatpush1.msra.mxu0 0.0
  %378 = vmatprep.subr.mxu0 0.0
  %379 = vmatpush1.msra.mxu0 0.0
  %380 = vmatprep.subr.mxu0 0.0
  %381 = vmatpush1.msra.mxu0 0.0
  %382 = vmatprep.subr.mxu0 0.0
  %383 = vmatpush1.msra.mxu0 0.0
  %384 = vmatprep.subr.mxu0 0.0
  %385 = vmatpush1.msra.mxu0 0.0
  %386 = vmatprep.subr.mxu0 0.0
  %387 = vmatpush1.msra.mxu0 0.0
  %388 = vmatprep.subr.mxu0 0.0
  %389 = vmatpush1.msra.mxu0 0.0
  %390 = vmatprep.subr.mxu0 0.0
  %391 = vmatpush1.msra.mxu0 0.0
  %392 = vmatprep.subr.mxu0 0.0
  %393 = vmatpush1.msra.mxu0 0.0
  %394 = vmatprep.mubr.f32.mxu0 0.0
  %395 = vmatmul.mubr.f32.gmra.mrb[0].mxu0 %v328
  %v396 = vpop.f32.mrb[0].mxu0
  %v397 = vadd.f32 %v166, %v396
  %v398 = vpop.f32.mrb[0].mxu0
  %v399 = vadd.f32 %v168, %v398
  %400 = vdwg.mxu0
  %v401 = vxor.u32 %v397, 2147483648
  %v402 = vxor.u32 %v399, 2147483648
  %v403 = vmul.f32 %v401, 1.442695
  %v404 = vpow.pop %v403
  %v405 = vmul.f32 %v402, 1.442695
  %v406 = vpow.pop %v405
  %v407 = vadd.f32 %v404, 1.0
  %v408 = vadd.f32 %v406, 1.0
  %v409 = vrcp.pop %v407
  %v410 = vmul.f32 1.0, %v409
  %v411 = vrcp.pop %v408
  %v412 = vmul.f32 1.0, %v411
  %v413 = vtanh.pop %v399
  %v414 = vmul.f32 %v410, %v320
  %416 = vrot.lane.b32.xlu0 %v413, 64
  %v417 = vpop.permute.xlu0 %416
  %v419 = vmul.f32 %v410, %v417
  %421 = vrot.lane.b32.xlu0 %v419, 64
  %v422 = vpop.permute.xlu0 %421
  %v424 = vadd.f32 %v414, %v422
  %v425 = vtanh.pop %v424
  %427 = vrot.lane.b32.xlu0 %v425, 64
  %v428 = vpop.permute.xlu0 %427
  %v430 = vmul.f32 %v412, %v428
  %v432 = vsel %vm222, %v430, 0
  %434 = vmatprep.subr.mxu0 %v207
  %435 = vmatpush1.msra.mxu0 %v206
  %436 = vmatprep.subr.mxu0 %v209
  %437 = vmatpush1.msra.mxu0 %v208
  %438 = vmatprep.subr.mxu0 %v211
  %439 = vmatpush1.msra.mxu0 %v210
  %440 = vmatprep.subr.mxu0 %v213
  %441 = vmatpush1.msra.mxu0 %v212
  %442 = vmatprep.subr.mxu0 %v215
  %443 = vmatpush1.msra.mxu0 %v214
  %444 = vmatprep.subr.mxu0 %v217
  %445 = vmatpush1.msra.mxu0 %v216
  %446 = vmatprep.subr.mxu0 %v219
  %447 = vmatpush1.msra.mxu0 %v218
  %448 = vmatprep.subr.mxu0 %v221
  %449 = vmatpush1.msra.mxu0 %v220
  %450 = vmatprep.subr.mxu0 0.0
  %451 = vmatpush1.msra.mxu0 0.0
  %452 = vmatprep.subr.mxu0 0.0
  %453 = vmatpush1.msra.mxu0 0.0
  %454 = vmatprep.subr.mxu0 0.0
  %455 = vmatpush1.msra.mxu0 0.0
  %456 = vmatprep.subr.mxu0 0.0
  %457 = vmatpush1.msra.mxu0 0.0
  %458 = vmatprep.subr.mxu0 0.0
  %459 = vmatpush1.msra.mxu0 0.0
  %460 = vmatprep.subr.mxu0 0.0
  %461 = vmatpush1.msra.mxu0 0.0
  %462 = vmatprep.subr.mxu0 0.0
  %463 = vmatpush1.msra.mxu0 0.0
  %464 = vmatprep.subr.mxu0 0.0
  %465 = vmatpush1.msra.mxu0 0.0
  %466 = vmatprep.subr.mxu0 0.0
  %467 = vmatpush1.msra.mxu0 0.0
  %468 = vmatprep.subr.mxu0 0.0
  %469 = vmatpush1.msra.mxu0 0.0
  %470 = vmatprep.subr.mxu0 0.0
  %471 = vmatpush1.msra.mxu0 0.0
  %472 = vmatprep.subr.mxu0 0.0
  %473 = vmatpush1.msra.mxu0 0.0
  %474 = vmatprep.subr.mxu0 0.0
  %475 = vmatpush1.msra.mxu0 0.0
  %476 = vmatprep.subr.mxu0 0.0
  %477 = vmatpush1.msra.mxu0 0.0
  %478 = vmatprep.subr.mxu0 0.0
  %479 = vmatpush1.msra.mxu0 0.0
  %480 = vmatprep.subr.mxu0 0.0
  %481 = vmatpush1.msra.mxu0 0.0
  %482 = vmatprep.subr.mxu0 0.0
  %483 = vmatpush1.msra.mxu0 0.0
  %484 = vmatprep.subr.mxu0 0.0
  %485 = vmatpush1.msra.mxu0 0.0
  %486 = vmatprep.subr.mxu0 0.0
  %487 = vmatpush1.msra.mxu0 0.0
  %488 = vmatprep.subr.mxu0 0.0
  %489 = vmatpush1.msra.mxu0 0.0
  %490 = vmatprep.subr.mxu0 0.0
  %491 = vmatpush1.msra.mxu0 0.0
  %492 = vmatprep.subr.mxu0 0.0
  %493 = vmatpush1.msra.mxu0 0.0
  %494 = vmatprep.subr.mxu0 0.0
  %495 = vmatpush1.msra.mxu0 0.0
  %496 = vmatprep.subr.mxu0 0.0
  %497 = vmatpush1.msra.mxu0 0.0
  %498 = vmatprep.mubr.f32.mxu0 0.0
  %499 = vmatmul.mubr.f32.gmra.mrb[0].mxu0 %v432
  %v500 = vpop.f32.mrb[0].mxu0
  %v501 = vadd.f32 %v172, %v500
  %v502 = vpop.f32.mrb[0].mxu0
  %v503 = vadd.f32 %v174, %v502
  %504 = vdwg.mxu0
  %v505 = vxor.u32 %v501, 2147483648
  %v506 = vxor.u32 %v503, 2147483648
  %v507 = vmul.f32 %v505, 1.442695
  %v508 = vpow.pop %v507
  %v509 = vmul.f32 %v506, 1.442695
  %v510 = vpow.pop %v509
  %v511 = vadd.f32 %v508, 1.0
  %v512 = vadd.f32 %v510, 1.0
  %v513 = vrcp.pop %v511
  %v514 = vmul.f32 1.0, %v513
  %v515 = vrcp.pop %v512
  %v516 = vmul.f32 1.0, %v515
  %v517 = vtanh.pop %v503
  %v518 = vmul.f32 %v514, %v424
  %520 = vrot.lane.b32.xlu0 %v517, 64
  %v521 = vpop.permute.xlu0 %520
  %v523 = vmul.f32 %v514, %v521
  %525 = vrot.lane.b32.xlu0 %v523, 64
  %v526 = vpop.permute.xlu0 %525
  %v528 = vadd.f32 %v518, %v526
  %v529 = vtanh.pop %v528
  %531 = vrot.lane.b32.xlu0 %v529, 64
  %v532 = vpop.permute.xlu0 %531
  %v534 = vmul.f32 %v516, %v532
  %v536 = vsel %vm222, %v534, 0
  %538 = vmatprep.subr.mxu0 %v207
  %539 = vmatpush1.msra.mxu0 %v206
  %540 = vmatprep.subr.mxu0 %v209
  %541 = vmatpush1.msra.mxu0 %v208
  %542 = vmatprep.subr.mxu0 %v211
  %543 = vmatpush1.msra.mxu0 %v210
  %544 = vmatprep.subr.mxu0 %v213
  %545 = vmatpush1.msra.mxu0 %v212
  %546 = vmatprep.subr.mxu0 %v215
  %547 = vmatpush1.msra.mxu0 %v214
  %548 = vmatprep.subr.mxu0 %v217
  %549 = vmatpush1.msra.mxu0 %v216
  %550 = vmatprep.subr.mxu0 %v219
  %551 = vmatpush1.msra.mxu0 %v218
  %552 = vmatprep.subr.mxu0 %v221
  %553 = vmatpush1.msra.mxu0 %v220
  %554 = vmatprep.subr.mxu0 0.0
  %555 = vmatpush1.msra.mxu0 0.0
  %556 = vmatprep.subr.mxu0 0.0
  %557 = vmatpush1.msra.mxu0 0.0
  %558 = vmatprep.subr.mxu0 0.0
  %559 = vmatpush1.msra.mxu0 0.0
  %560 = vmatprep.subr.mxu0 0.0
  %561 = vmatpush1.msra.mxu0 0.0
  %562 = vmatprep.subr.mxu0 0.0
  %563 = vmatpush1.msra.mxu0 0.0
  %564 = vmatprep.subr.mxu0 0.0
  %565 = vmatpush1.msra.mxu0 0.0
  %566 = vmatprep.subr.mxu0 0.0
  %567 = vmatpush1.msra.mxu0 0.0
  %568 = vmatprep.subr.mxu0 0.0
  %569 = vmatpush1.msra.mxu0 0.0
  %570 = vmatprep.subr.mxu0 0.0
  %571 = vmatpush1.msra.mxu0 0.0
  %572 = vmatprep.subr.mxu0 0.0
  %573 = vmatpush1.msra.mxu0 0.0
  %574 = vmatprep.subr.mxu0 0.0
  %575 = vmatpush1.msra.mxu0 0.0
  %576 = vmatprep.subr.mxu0 0.0
  %577 = vmatpush1.msra.mxu0 0.0
  %578 = vmatprep.subr.mxu0 0.0
  %579 = vmatpush1.msra.mxu0 0.0
  %580 = vmatprep.subr.mxu0 0.0
  %581 = vmatpush1.msra.mxu0 0.0
  %582 = vmatprep.subr.mxu0 0.0
  %583 = vmatpush1.msra.mxu0 0.0
  %584 = vmatprep.subr.mxu0 0.0
  %585 = vmatpush1.msra.mxu0 0.0
  %586 = vmatprep.subr.mxu0 0.0
  %587 = vmatpush1.msra.mxu0 0.0
  %588 = vmatprep.subr.mxu0 0.0
  %589 = vmatpush1.msra.mxu0 0.0
  %590 = vmatprep.subr.mxu0 0.0
  %591 = vmatpush1.msra.mxu0 0.0
  %592 = vmatprep.subr.mxu0 0.0
  %593 = vmatpush1.msra.mxu0 0.0
  %594 = vmatprep.subr.mxu0 0.0
  %595 = vmatpush1.msra.mxu0 0.0
  %596 = vmatprep.subr.mxu0 0.0
  %597 = vmatpush1.msra.mxu0 0.0
  %598 = vmatprep.subr.mxu0 0.0
  %599 = vmatpush1.msra.mxu0 0.0
  %600 = vmatprep.subr.mxu0 0.0
  %601 = vmatpush1.msra.mxu0 0.0
  %602 = vmatprep.mubr.f32.mxu0 0.0
  %603 = vmatmul.mubr.f32.gmra.mrb[0].mxu0 %v536
  %v604 = vpop.f32.mrb[0].mxu0
  %v605 = vadd.f32 %v178, %v604
  %v606 = vpop.f32.mrb[0].mxu0
  %v607 = vadd.f32 %v180, %v606
  %608 = vdwg.mxu0
  %v609 = vxor.u32 %v605, 2147483648
  %v610 = vxor.u32 %v607, 2147483648
  %v611 = vmul.f32 %v609, 1.442695
  %v612 = vpow.pop %v611
  %v613 = vmul.f32 %v610, 1.442695
  %v614 = vpow.pop %v613
  %v615 = vadd.f32 %v612, 1.0
  %v616 = vadd.f32 %v614, 1.0
  %v617 = vrcp.pop %v615
  %v618 = vmul.f32 1.0, %v617
  %v619 = vrcp.pop %v616
  %v620 = vmul.f32 1.0, %v619
  %v621 = vtanh.pop %v607
  %v622 = vmul.f32 %v618, %v528
  %624 = vrot.lane.b32.xlu0 %v621, 64
  %v625 = vpop.permute.xlu0 %624
  %v627 = vmul.f32 %v618, %v625
  %629 = vrot.lane.b32.xlu0 %v627, 64
  %v630 = vpop.permute.xlu0 %629
  %v632 = vadd.f32 %v622, %v630
  %v633 = vtanh.pop %v632
  %635 = vrot.lane.b32.xlu0 %v633, 64
  %v636 = vpop.permute.xlu0 %635
  %v638 = vmul.f32 %v620, %v636
  %v640 = vsel %vm222, %v638, 0
  %642 = vmatprep.subr.mxu0 %v207
  %643 = vmatpush1.msra.mxu0 %v206
  %644 = vmatprep.subr.mxu0 %v209
  %645 = vmatpush1.msra.mxu0 %v208
  %646 = vmatprep.subr.mxu0 %v211
  %647 = vmatpush1.msra.mxu0 %v210
  %648 = vmatprep.subr.mxu0 %v213
  %649 = vmatpush1.msra.mxu0 %v212
  %650 = vmatprep.subr.mxu0 %v215
  %651 = vmatpush1.msra.mxu0 %v214
  %652 = vmatprep.subr.mxu0 %v217
  %653 = vmatpush1.msra.mxu0 %v216
  %654 = vmatprep.subr.mxu0 %v219
  %655 = vmatpush1.msra.mxu0 %v218
  %656 = vmatprep.subr.mxu0 %v221
  %657 = vmatpush1.msra.mxu0 %v220
  %658 = vmatprep.subr.mxu0 0.0
  %659 = vmatpush1.msra.mxu0 0.0
  %660 = vmatprep.subr.mxu0 0.0
  %661 = vmatpush1.msra.mxu0 0.0
  %662 = vmatprep.subr.mxu0 0.0
  %663 = vmatpush1.msra.mxu0 0.0
  %664 = vmatprep.subr.mxu0 0.0
  %665 = vmatpush1.msra.mxu0 0.0
  %666 = vmatprep.subr.mxu0 0.0
  %667 = vmatpush1.msra.mxu0 0.0
  %668 = vmatprep.subr.mxu0 0.0
  %669 = vmatpush1.msra.mxu0 0.0
  %670 = vmatprep.subr.mxu0 0.0
  %671 = vmatpush1.msra.mxu0 0.0
  %672 = vmatprep.subr.mxu0 0.0
  %673 = vmatpush1.msra.mxu0 0.0
  %674 = vmatprep.subr.mxu0 0.0
  %675 = vmatpush1.msra.mxu0 0.0
  %676 = vmatprep.subr.mxu0 0.0
  %677 = vmatpush1.msra.mxu0 0.0
  %678 = vmatprep.subr.mxu0 0.0
  %679 = vmatpush1.msra.mxu0 0.0
  %680 = vmatprep.subr.mxu0 0.0
  %681 = vmatpush1.msra.mxu0 0.0
  %682 = vmatprep.subr.mxu0 0.0
  %683 = vmatpush1.msra.mxu0 0.0
  %684 = vmatprep.subr.mxu0 0.0
  %685 = vmatpush1.msra.mxu0 0.0
  %686 = vmatprep.subr.mxu0 0.0
  %687 = vmatpush1.msra.mxu0 0.0
  %688 = vmatprep.subr.mxu0 0.0
  %689 = vmatpush1.msra.mxu0 0.0
  %690 = vmatprep.subr.mxu0 0.0
  %691 = vmatpush1.msra.mxu0 0.0
  %692 = vmatprep.subr.mxu0 0.0
  %693 = vmatpush1.msra.mxu0 0.0
  %694 = vmatprep.subr.mxu0 0.0
  %695 = vmatpush1.msra.mxu0 0.0
  %696 = vmatprep.subr.mxu0 0.0
  %697 = vmatpush1.msra.mxu0 0.0
  %698 = vmatprep.subr.mxu0 0.0
  %699 = vmatpush1.msra.mxu0 0.0
  %700 = vmatprep.subr.mxu0 0.0
  %701 = vmatpush1.msra.mxu0 0.0
  %702 = vmatprep.subr.mxu0 0.0
  %703 = vmatpush1.msra.mxu0 0.0
  %704 = vmatprep.subr.mxu0 0.0
  %705 = vmatpush1.msra.mxu0 0.0
  %706 = vmatprep.mubr.f32.mxu0 0.0
  %707 = vmatmul.mubr.f32.gmra.mrb[0].mxu0 %v640
  %v708 = vpop.f32.mrb[0].mxu0
  %v709 = vadd.f32 %v184, %v708
  %v710 = vpop.f32.mrb[0].mxu0
  %v711 = vadd.f32 %v186, %v710
  %712 = vdwg.mxu0
  %v713 = vxor.u32 %v709, 2147483648
  %v714 = vxor.u32 %v711, 2147483648
  %v715 = vmul.f32 %v713, 1.442695
  %v716 = vpow.pop %v715
  %v717 = vmul.f32 %v714, 1.442695
  %v718 = vpow.pop %v717
  %v719 = vadd.f32 %v716, 1.0
  %v720 = vadd.f32 %v718, 1.0
  %v721 = vrcp.pop %v719
  %v722 = vmul.f32 1.0, %v721
  %v723 = vrcp.pop %v720
  %v724 = vmul.f32 1.0, %v723
  %v725 = vtanh.pop %v711
  %v726 = vmul.f32 %v722, %v632
  %728 = vrot.lane.b32.xlu0 %v725, 64
  %v729 = vpop.permute.xlu0 %728
  %v731 = vmul.f32 %v722, %v729
  %733 = vrot.lane.b32.xlu0 %v731, 64
  %v734 = vpop.permute.xlu0 %733
  %v736 = vadd.f32 %v726, %v734
  %v737 = vtanh.pop %v736
  %739 = vrot.lane.b32.xlu0 %v737, 64
  %v740 = vpop.permute.xlu0 %739
  %v742 = vmul.f32 %v724, %v740
  %v744 = vsel %vm222, %v742, 0
  %746 = vmatprep.subr.mxu0 %v207
  %747 = vmatpush1.msra.mxu0 %v206
  %748 = vmatprep.subr.mxu0 %v209
  %749 = vmatpush1.msra.mxu0 %v208
  %750 = vmatprep.subr.mxu0 %v211
  %751 = vmatpush1.msra.mxu0 %v210
  %752 = vmatprep.subr.mxu0 %v213
  %753 = vmatpush1.msra.mxu0 %v212
  %754 = vmatprep.subr.mxu0 %v215
  %755 = vmatpush1.msra.mxu0 %v214
  %756 = vmatprep.subr.mxu0 %v217
  %757 = vmatpush1.msra.mxu0 %v216
  %758 = vmatprep.subr.mxu0 %v219
  %759 = vmatpush1.msra.mxu0 %v218
  %760 = vmatprep.subr.mxu0 %v221
  %761 = vmatpush1.msra.mxu0 %v220
  %762 = vmatprep.subr.mxu0 0.0
  %763 = vmatpush1.msra.mxu0 0.0
  %764 = vmatprep.subr.mxu0 0.0
  %765 = vmatpush1.msra.mxu0 0.0
  %766 = vmatprep.subr.mxu0 0.0
  %767 = vmatpush1.msra.mxu0 0.0
  %768 = vmatprep.subr.mxu0 0.0
  %769 = vmatpush1.msra.mxu0 0.0
  %770 = vmatprep.subr.mxu0 0.0
  %771 = vmatpush1.msra.mxu0 0.0
  %772 = vmatprep.subr.mxu0 0.0
  %773 = vmatpush1.msra.mxu0 0.0
  %774 = vmatprep.subr.mxu0 0.0
  %775 = vmatpush1.msra.mxu0 0.0
  %776 = vmatprep.subr.mxu0 0.0
  %777 = vmatpush1.msra.mxu0 0.0
  %778 = vmatprep.subr.mxu0 0.0
  %779 = vmatpush1.msra.mxu0 0.0
  %780 = vmatprep.subr.mxu0 0.0
  %781 = vmatpush1.msra.mxu0 0.0
  %782 = vmatprep.subr.mxu0 0.0
  %783 = vmatpush1.msra.mxu0 0.0
  %784 = vmatprep.subr.mxu0 0.0
  %785 = vmatpush1.msra.mxu0 0.0
  %786 = vmatprep.subr.mxu0 0.0
  %787 = vmatpush1.msra.mxu0 0.0
  %788 = vmatprep.subr.mxu0 0.0
  %789 = vmatpush1.msra.mxu0 0.0
  %790 = vmatprep.subr.mxu0 0.0
  %791 = vmatpush1.msra.mxu0 0.0
  %792 = vmatprep.subr.mxu0 0.0
  %793 = vmatpush1.msra.mxu0 0.0
  %794 = vmatprep.subr.mxu0 0.0
  %795 = vmatpush1.msra.mxu0 0.0
  %796 = vmatprep.subr.mxu0 0.0
  %797 = vmatpush1.msra.mxu0 0.0
  %798 = vmatprep.subr.mxu0 0.0
  %799 = vmatpush1.msra.mxu0 0.0
  %800 = vmatprep.subr.mxu0 0.0
  %801 = vmatpush1.msra.mxu0 0.0
  %802 = vmatprep.subr.mxu0 0.0
  %803 = vmatpush1.msra.mxu0 0.0
  %804 = vmatprep.subr.mxu0 0.0
  %805 = vmatpush1.msra.mxu0 0.0
  %806 = vmatprep.subr.mxu0 0.0
  %807 = vmatpush1.msra.mxu0 0.0
  %808 = vmatprep.subr.mxu0 0.0
  %809 = vmatpush1.msra.mxu0 0.0
  %810 = vmatprep.mubr.f32.mxu0 0.0
  %811 = vmatmul.mubr.f32.gmra.mrb[0].mxu0 %v744
  %v812 = vpop.f32.mrb[0].mxu0
  %v813 = vadd.f32 %v190, %v812
  %v814 = vpop.f32.mrb[0].mxu0
  %v815 = vadd.f32 %v192, %v814
  %816 = vdwg.mxu0
  %v817 = vxor.u32 %v813, 2147483648
  %v818 = vxor.u32 %v815, 2147483648
  %v819 = vmul.f32 %v817, 1.442695
  %v820 = vpow.pop %v819
  %v821 = vmul.f32 %v818, 1.442695
  %v822 = vpow.pop %v821
  %v823 = vadd.f32 %v820, 1.0
  %v824 = vadd.f32 %v822, 1.0
  %v825 = vrcp.pop %v823
  %v826 = vmul.f32 1.0, %v825
  %v827 = vrcp.pop %v824
  %v828 = vmul.f32 1.0, %v827
  %v829 = vtanh.pop %v815
  %v830 = vmul.f32 %v826, %v736
  %832 = vrot.lane.b32.xlu0 %v829, 64
  %v833 = vpop.permute.xlu0 %832
  %v835 = vmul.f32 %v826, %v833
  %837 = vrot.lane.b32.xlu0 %v835, 64
  %v838 = vpop.permute.xlu0 %837
  %v840 = vadd.f32 %v830, %v838
  %v841 = vtanh.pop %v840
  %843 = vrot.lane.b32.xlu0 %v841, 64
  %v844 = vpop.permute.xlu0 %843
  %v846 = vmul.f32 %v828, %v844
  %v848 = vsel %vm222, %v846, 0
  %850 = vmatprep.subr.mxu0 %v207
  %851 = vmatpush1.msra.mxu0 %v206
  %852 = vmatprep.subr.mxu0 %v209
  %853 = vmatpush1.msra.mxu0 %v208
  %854 = vmatprep.subr.mxu0 %v211
  %855 = vmatpush1.msra.mxu0 %v210
  %856 = vmatprep.subr.mxu0 %v213
  %857 = vmatpush1.msra.mxu0 %v212
  %858 = vmatprep.subr.mxu0 %v215
  %859 = vmatpush1.msra.mxu0 %v214
  %860 = vmatprep.subr.mxu0 %v217
  %861 = vmatpush1.msra.mxu0 %v216
  %862 = vmatprep.subr.mxu0 %v219
  %863 = vmatpush1.msra.mxu0 %v218
  %864 = vmatprep.subr.mxu0 %v221
  %865 = vmatpush1.msra.mxu0 %v220
  %866 = vmatprep.subr.mxu0 0.0
  %867 = vmatpush1.msra.mxu0 0.0
  %868 = vmatprep.subr.mxu0 0.0
  %869 = vmatpush1.msra.mxu0 0.0
  %870 = vmatprep.subr.mxu0 0.0
  %871 = vmatpush1.msra.mxu0 0.0
  %872 = vmatprep.subr.mxu0 0.0
  %873 = vmatpush1.msra.mxu0 0.0
  %874 = vmatprep.subr.mxu0 0.0
  %875 = vmatpush1.msra.mxu0 0.0
  %876 = vmatprep.subr.mxu0 0.0
  %877 = vmatpush1.msra.mxu0 0.0
  %878 = vmatprep.subr.mxu0 0.0
  %879 = vmatpush1.msra.mxu0 0.0
  %880 = vmatprep.subr.mxu0 0.0
  %881 = vmatpush1.msra.mxu0 0.0
  %882 = vmatprep.subr.mxu0 0.0
  %883 = vmatpush1.msra.mxu0 0.0
  %884 = vmatprep.subr.mxu0 0.0
  %885 = vmatpush1.msra.mxu0 0.0
  %886 = vmatprep.subr.mxu0 0.0
  %887 = vmatpush1.msra.mxu0 0.0
  %888 = vmatprep.subr.mxu0 0.0
  %889 = vmatpush1.msra.mxu0 0.0
  %890 = vmatprep.subr.mxu0 0.0
  %891 = vmatpush1.msra.mxu0 0.0
  %892 = vmatprep.subr.mxu0 0.0
  %893 = vmatpush1.msra.mxu0 0.0
  %894 = vmatprep.subr.mxu0 0.0
  %895 = vmatpush1.msra.mxu0 0.0
  %896 = vmatprep.subr.mxu0 0.0
  %897 = vmatpush1.msra.mxu0 0.0
  %898 = vmatprep.subr.mxu0 0.0
  %899 = vmatpush1.msra.mxu0 0.0
  %900 = vmatprep.subr.mxu0 0.0
  %901 = vmatpush1.msra.mxu0 0.0
  %902 = vmatprep.subr.mxu0 0.0
  %903 = vmatpush1.msra.mxu0 0.0
  %904 = vmatprep.subr.mxu0 0.0
  %905 = vmatpush1.msra.mxu0 0.0
  %906 = vmatprep.subr.mxu0 0.0
  %907 = vmatpush1.msra.mxu0 0.0
  %908 = vmatprep.subr.mxu0 0.0
  %909 = vmatpush1.msra.mxu0 0.0
  %910 = vmatprep.subr.mxu0 0.0
  %911 = vmatpush1.msra.mxu0 0.0
  %912 = vmatprep.subr.mxu0 0.0
  %913 = vmatpush1.msra.mxu0 0.0
  %914 = vmatprep.mubr.f32.mxu0 0.0
  %915 = vmatmul.mubr.f32.gmra.mrb[0].mxu0 %v848
  %v916 = vpop.f32.mrb[0].mxu0
  %v917 = vadd.f32 %v196, %v916
  %v918 = vpop.f32.mrb[0].mxu0
  %v919 = vadd.f32 %v198, %v918
  %920 = vdwg.mxu0
  %v921 = vxor.u32 %v917, 2147483648
  %v922 = vxor.u32 %v919, 2147483648
  %v923 = vmul.f32 %v921, 1.442695
  %v924 = vpow.pop %v923
  %v925 = vmul.f32 %v922, 1.442695
  %v926 = vpow.pop %v925
  %v927 = vadd.f32 %v924, 1.0
  %v928 = vadd.f32 %v926, 1.0
  %v929 = vrcp.pop %v927
  %v930 = vmul.f32 1.0, %v929
  %v931 = vrcp.pop %v928
  %v932 = vmul.f32 1.0, %v931
  %v933 = vtanh.pop %v919
  %v934 = vmul.f32 %v930, %v840
  %936 = vrot.lane.b32.xlu0 %v933, 64
  %v937 = vpop.permute.xlu0 %936
  %v939 = vmul.f32 %v930, %v937
  %941 = vrot.lane.b32.xlu0 %v939, 64
  %v942 = vpop.permute.xlu0 %941
  %v944 = vadd.f32 %v934, %v942
  %v945 = vtanh.pop %v944
  %947 = vrot.lane.b32.xlu0 %v945, 64
  %v948 = vpop.permute.xlu0 %947
  %v950 = vmul.f32 %v932, %v948
  %v952 = vsel %vm222, %v950, 0
  %954 = vmatprep.subr.mxu0 %v207
  %955 = vmatpush1.msra.mxu0 %v206
  %956 = vmatprep.subr.mxu0 %v209
  %957 = vmatpush1.msra.mxu0 %v208
  %958 = vmatprep.subr.mxu0 %v211
  %959 = vmatpush1.msra.mxu0 %v210
  %960 = vmatprep.subr.mxu0 %v213
  %961 = vmatpush1.msra.mxu0 %v212
  %962 = vmatprep.subr.mxu0 %v215
  %963 = vmatpush1.msra.mxu0 %v214
  %964 = vmatprep.subr.mxu0 %v217
  %965 = vmatpush1.msra.mxu0 %v216
  %966 = vmatprep.subr.mxu0 %v219
  %967 = vmatpush1.msra.mxu0 %v218
  %968 = vmatprep.subr.mxu0 %v221
  %969 = vmatpush1.msra.mxu0 %v220
  %970 = vmatprep.subr.mxu0 0.0
  %971 = vmatpush1.msra.mxu0 0.0
  %972 = vmatprep.subr.mxu0 0.0
  %973 = vmatpush1.msra.mxu0 0.0
  %974 = vmatprep.subr.mxu0 0.0
  %975 = vmatpush1.msra.mxu0 0.0
  %976 = vmatprep.subr.mxu0 0.0
  %977 = vmatpush1.msra.mxu0 0.0
  %978 = vmatprep.subr.mxu0 0.0
  %979 = vmatpush1.msra.mxu0 0.0
  %980 = vmatprep.subr.mxu0 0.0
  %981 = vmatpush1.msra.mxu0 0.0
  %982 = vmatprep.subr.mxu0 0.0
  %983 = vmatpush1.msra.mxu0 0.0
  %984 = vmatprep.subr.mxu0 0.0
  %985 = vmatpush1.msra.mxu0 0.0
  %986 = vmatprep.subr.mxu0 0.0
  %987 = vmatpush1.msra.mxu0 0.0
  %988 = vmatprep.subr.mxu0 0.0
  %989 = vmatpush1.msra.mxu0 0.0
  %990 = vmatprep.subr.mxu0 0.0
  %991 = vmatpush1.msra.mxu0 0.0
  %992 = vmatprep.subr.mxu0 0.0
  %993 = vmatpush1.msra.mxu0 0.0
  %994 = vmatprep.subr.mxu0 0.0
  %995 = vmatpush1.msra.mxu0 0.0
  %996 = vmatprep.subr.mxu0 0.0
  %997 = vmatpush1.msra.mxu0 0.0
  %998 = vmatprep.subr.mxu0 0.0
  %999 = vmatpush1.msra.mxu0 0.0
  %1000 = vmatprep.subr.mxu0 0.0
  %1001 = vmatpush1.msra.mxu0 0.0
  %1002 = vmatprep.subr.mxu0 0.0
  %1003 = vmatpush1.msra.mxu0 0.0
  %1004 = vmatprep.subr.mxu0 0.0
  %1005 = vmatpush1.msra.mxu0 0.0
  %1006 = vmatprep.subr.mxu0 0.0
  %1007 = vmatpush1.msra.mxu0 0.0
  %1008 = vmatprep.subr.mxu0 0.0
  %1009 = vmatpush1.msra.mxu0 0.0
  %1010 = vmatprep.subr.mxu0 0.0
  %1011 = vmatpush1.msra.mxu0 0.0
  %1012 = vmatprep.subr.mxu0 0.0
  %1013 = vmatpush1.msra.mxu0 0.0
  %1014 = vmatprep.subr.mxu0 0.0
  %1015 = vmatpush1.msra.mxu0 0.0
  %1016 = vmatprep.subr.mxu0 0.0
  %1017 = vmatpush1.msra.mxu0 0.0
  %1018 = vmatprep.mubr.f32.mxu0 0.0
  %1019 = vmatmul.mubr.f32.gmra.mrb[0].mxu0 %v952
  %v1020 = vpop.f32.mrb[0].mxu0
  %v1021 = vadd.f32 %v202, %v1020
  %v1022 = vpop.f32.mrb[0].mxu0
  %v1023 = vadd.f32 %v204, %v1022
  %1024 = vdwg.mxu0
  %v1025 = vxor.u32 %v1021, 2147483648
  %v1026 = vxor.u32 %v1023, 2147483648
  %v1027 = vmul.f32 %v1025, 1.442695
  %v1028 = vpow.pop %v1027
  %v1029 = vmul.f32 %v1026, 1.442695
  %v1030 = vpow.pop %v1029
  %v1031 = vadd.f32 %v1028, 1.0
  %v1032 = vadd.f32 %v1030, 1.0
  %v1033 = vrcp.pop %v1031
  %v1034 = vmul.f32 1.0, %v1033
  %v1035 = vrcp.pop %v1032
  %v1036 = vmul.f32 1.0, %v1035
  %v1037 = vtanh.pop %v1023
  %v1038 = vmul.f32 %v1034, %v944
  %1040 = vrot.lane.b32.xlu0 %v1037, 64
  %v1041 = vpop.permute.xlu0 %1040
  %v1043 = vmul.f32 %v1034, %v1041
  %1045 = vrot.lane.b32.xlu0 %v1043, 64
  %v1046 = vpop.permute.xlu0 %1045
  %v1048 = vadd.f32 %v1038, %v1046
  %v1049 = vtanh.pop %v1048
  %1051 = vrot.lane.b32.xlu0 %v1049, 64
  %v1052 = vpop.permute.xlu0 %1051
  %v1054 = vmul.f32 %v1036, %v1052
  %v1055 = vsel %vm222, %v326, 0.0
  %1056 = vadd.xlane.f32.xlu0 %v1055
  %v1057 = vpop.xlane.xlu0 %1056
  %v1058 = vsel %vm222, %v430, 0.0
  %1059 = vadd.xlane.f32.xlu0 %v1058
  %v1060 = vpop.xlane.xlu0 %1059
  %v1061 = vsel %vm222, %v534, 0.0
  %1062 = vadd.xlane.f32.xlu0 %v1061
  %v1063 = vpop.xlane.xlu0 %1062
  %v1064 = vsel %vm222, %v638, 0.0
  %1065 = vadd.xlane.f32.xlu0 %v1064
  %v1066 = vpop.xlane.xlu0 %1065
  %v1067 = vsel %vm222, %v742, 0.0
  %1068 = vadd.xlane.f32.xlu0 %v1067
  %v1069 = vpop.xlane.xlu0 %1068
  %v1070 = vsel %vm222, %v846, 0.0
  %1071 = vadd.xlane.f32.xlu0 %v1070
  %v1072 = vpop.xlane.xlu0 %1071
  %v1073 = vsel %vm222, %v950, 0.0
  %1074 = vadd.xlane.f32.xlu0 %v1073
  %v1075 = vpop.xlane.xlu0 %1074
  %v1076 = vsel %vm222, %v1054, 0.0
  %1077 = vadd.xlane.f32.xlu0 %v1076
  %v1078 = vpop.xlane.xlu0 %1077
  %v1079 = vrcp.pop 64.0
  %v1080 = vmul.f32 %v1057, %v1079
  %v1081 = vmul.f32 %v1060, %v1079
  %v1082 = vmul.f32 %v1063, %v1079
  %v1083 = vmul.f32 %v1066, %v1079
  %v1084 = vmul.f32 %v1069, %v1079
  %v1085 = vmul.f32 %v1072, %v1079
  %v1086 = vmul.f32 %v1075, %v1079
  %v1087 = vmul.f32 %v1078, %v1079
  %v1088 = vsub.f32 %v326, %v1080
  %v1089 = vsub.f32 %v430, %v1081
  %v1090 = vsub.f32 %v534, %v1082
  %v1091 = vsub.f32 %v638, %v1083
  %v1092 = vsub.f32 %v742, %v1084
  %v1093 = vsub.f32 %v846, %v1085
  %v1094 = vsub.f32 %v950, %v1086
  %v1095 = vsub.f32 %v1054, %v1087
  %v1096 = vmul.f32 %v1088, %v1088
  %v1097 = vmul.f32 %v1089, %v1089
  %v1098 = vmul.f32 %v1090, %v1090
  %v1099 = vmul.f32 %v1091, %v1091
  %v1100 = vmul.f32 %v1092, %v1092
  %v1101 = vmul.f32 %v1093, %v1093
  %v1102 = vmul.f32 %v1094, %v1094
  %v1103 = vmul.f32 %v1095, %v1095
  %v1104 = vsel %vm222, %v1096, 0.0
  %1105 = vadd.xlane.f32.xlu0 %v1104
  %v1106 = vpop.xlane.xlu0 %1105
  %v1107 = vsel %vm222, %v1097, 0.0
  %1108 = vadd.xlane.f32.xlu0 %v1107
  %v1109 = vpop.xlane.xlu0 %1108
  %v1110 = vsel %vm222, %v1098, 0.0
  %1111 = vadd.xlane.f32.xlu0 %v1110
  %v1112 = vpop.xlane.xlu0 %1111
  %v1113 = vsel %vm222, %v1099, 0.0
  %1114 = vadd.xlane.f32.xlu0 %v1113
  %v1115 = vpop.xlane.xlu0 %1114
  %v1116 = vsel %vm222, %v1100, 0.0
  %1117 = vadd.xlane.f32.xlu0 %v1116
  %v1118 = vpop.xlane.xlu0 %1117
  %v1119 = vsel %vm222, %v1101, 0.0
  %1120 = vadd.xlane.f32.xlu0 %v1119
  %v1121 = vpop.xlane.xlu0 %1120
  %v1122 = vsel %vm222, %v1102, 0.0
  %1123 = vadd.xlane.f32.xlu0 %v1122
  %v1124 = vpop.xlane.xlu0 %1123
  %v1125 = vsel %vm222, %v1103, 0.0
  %1126 = vadd.xlane.f32.xlu0 %v1125
  %v1127 = vpop.xlane.xlu0 %1126
  %v1128 = vmul.f32 %v1106, %v1079
  %v1129 = vmul.f32 %v1109, %v1079
  %v1130 = vmul.f32 %v1112, %v1079
  %v1131 = vmul.f32 %v1115, %v1079
  %v1132 = vmul.f32 %v1118, %v1079
  %v1133 = vmul.f32 %v1121, %v1079
  %v1134 = vmul.f32 %v1124, %v1079
  %v1135 = vmul.f32 %v1127, %v1079
  %v1136 = vadd.f32 %v1128, 1e-05
  %v1137 = vadd.f32 %v1129, 1e-05
  %v1138 = vadd.f32 %v1130, 1e-05
  %v1139 = vadd.f32 %v1131, 1e-05
  %v1140 = vadd.f32 %v1132, 1e-05
  %v1141 = vadd.f32 %v1133, 1e-05
  %v1142 = vadd.f32 %v1134, 1e-05
  %v1143 = vadd.f32 %v1135, 1e-05
  %v1144 = vrsqrt.pop %v1136
  %v1145 = vrsqrt.pop %v1137
  %v1146 = vrsqrt.pop %v1138
  %v1147 = vrsqrt.pop %v1139
  %v1148 = vrsqrt.pop %v1140
  %v1149 = vrsqrt.pop %v1141
  %v1150 = vrsqrt.pop %v1142
  %v1151 = vrsqrt.pop %v1143
  %v1152 = vmul.f32 %v1088, %v1144
  %v1153 = vmul.f32 %v1089, %v1145
  %v1154 = vmul.f32 %v1090, %v1146
  %v1155 = vmul.f32 %v1091, %v1147
  %v1156 = vmul.f32 %v1092, %v1148
  %v1157 = vmul.f32 %v1093, %v1149
  %v1158 = vmul.f32 %v1094, %v1150
  %v1159 = vmul.f32 %v1095, %v1151
  %v1160 = vld [vmem:[%s4] sm:$0x1]
  %v1162 = vlaneseq
  %v1163 = vshrl.u32 %v1162, 7
  %v1164 = vsub.s32 0, %v1163
  %v1165 = vrot.slane %v1160, %v1164
  %v1167 = vmul.f32 %v1152, %v1165
  %v1168 = vmul.f32 %v1153, %v1165
  %v1169 = vmul.f32 %v1154, %v1165
  %v1170 = vmul.f32 %v1155, %v1165
  %v1171 = vmul.f32 %v1156, %v1165
  %v1172 = vmul.f32 %v1157, %v1165
  %v1173 = vmul.f32 %v1158, %v1165
  %v1174 = vmul.f32 %v1159, %v1165
  %v1175 = vld [vmem:[%s5] sm:$0x1]
  %v1177 = vlaneseq
  %v1178 = vshrl.u32 %v1177, 7
  %v1179 = vsub.s32 0, %v1178
  %v1180 = vrot.slane %v1175, %v1179
  %v1182 = vadd.f32 %v1167, %v1180
  %v1183 = vadd.f32 %v1168, %v1180
  %v1184 = vadd.f32 %v1169, %v1180
  %v1185 = vadd.f32 %v1170, %v1180
  %v1186 = vadd.f32 %v1171, %v1180
  %v1187 = vadd.f32 %v1172, %v1180
  %v1188 = vadd.f32 %v1173, %v1180
  %v1189 = vadd.f32 %v1174, %v1180
  %v1190 = vcombine.low %v1182, %v1184
  %v1191 = vcombine.high %v1182, %v1184
  %v1193 = vunpack.c.l.s4 1983009808
  %v1194 = vunpack.c.0.s8 %v1193
  %v1195 = vlaneseq
  %v1196 = vshrl.u32 %v1195, 7
  %v1197 = vsub.s32 %v1194, %v1196
  %v1198 = vrot.slane %v1190, %v1197
  %v1200 = vunpack.c.l.s4 1983009808
  %v1201 = vunpack.c.0.s8 %v1200
  %v1202 = vlaneseq
  %v1203 = vshrl.u32 %v1202, 7
  %v1204 = vsub.s32 %v1201, %v1203
  %v1205 = vrot.slane %v1191, %v1204
  %v1206 = vcombine.low %v1183, %v1185
  %v1207 = vcombine.high %v1183, %v1185
  %v1209 = vunpack.c.l.s4 1983009808
  %v1210 = vunpack.c.0.s8 %v1209
  %v1211 = vlaneseq
  %v1212 = vshrl.u32 %v1211, 7
  %v1213 = vsub.s32 %v1210, %v1212
  %v1214 = vrot.slane %v1206, %v1213
  %v1216 = vunpack.c.l.s4 1983009808
  %v1217 = vunpack.c.0.s8 %v1216
  %v1218 = vlaneseq
  %v1219 = vshrl.u32 %v1218, 7
  %v1220 = vsub.s32 %v1217, %v1219
  %v1221 = vrot.slane %v1207, %v1220
  %v1222 = vcombine.low %v1186, %v1188
  %v1223 = vcombine.high %v1186, %v1188
  %v1225 = vunpack.c.l.s4 1983009808
  %v1226 = vunpack.c.0.s8 %v1225
  %v1227 = vlaneseq
  %v1228 = vshrl.u32 %v1227, 7
  %v1229 = vsub.s32 %v1226, %v1228
  %v1230 = vrot.slane %v1222, %v1229
  %v1232 = vunpack.c.l.s4 1983009808
  %v1233 = vunpack.c.0.s8 %v1232
  %v1234 = vlaneseq
  %v1235 = vshrl.u32 %v1234, 7
  %v1236 = vsub.s32 %v1233, %v1235
  %v1237 = vrot.slane %v1223, %v1236
  %v1238 = vcombine.low %v1187, %v1189
  %v1239 = vcombine.high %v1187, %v1189
  %v1241 = vunpack.c.l.s4 1983009808
  %v1242 = vunpack.c.0.s8 %v1241
  %v1243 = vlaneseq
  %v1244 = vshrl.u32 %v1243, 7
  %v1245 = vsub.s32 %v1242, %v1244
  %v1246 = vrot.slane %v1238, %v1245
  %v1248 = vunpack.c.l.s4 1983009808
  %v1249 = vunpack.c.0.s8 %v1248
  %v1250 = vlaneseq
  %v1251 = vshrl.u32 %v1250, 7
  %v1252 = vsub.s32 %v1249, %v1251
  %v1253 = vrot.slane %v1239, %v1252
  %v1254 = vcombine.low %v1198, %v1214
  %v1255 = vcombine.high %v1198, %v1214
  %v1257 = vunpack.c.l.s4 1934713408
  %v1258 = vunpack.c.0.s8 %v1257
  %v1259 = vlaneseq
  %v1260 = vshrl.u32 %v1259, 7
  %v1261 = vsub.s32 %v1258, %v1260
  %v1262 = vrot.slane %v1254, %v1261
  %v1264 = vunpack.c.l.s4 1934713408
  %v1265 = vunpack.c.0.s8 %v1264
  %v1266 = vlaneseq
  %v1267 = vshrl.u32 %v1266, 7
  %v1268 = vsub.s32 %v1265, %v1267
  %v1269 = vrot.slane %v1255, %v1268
  %v1270 = vcombine.low %v1205, %v1221
  %v1271 = vcombine.high %v1205, %v1221
  %v1273 = vunpack.c.l.s4 1934713408
  %v1274 = vunpack.c.0.s8 %v1273
  %v1275 = vlaneseq
  %v1276 = vshrl.u32 %v1275, 7
  %v1277 = vsub.s32 %v1274, %v1276
  %v1278 = vrot.slane %v1270, %v1277
  %v1280 = vunpack.c.l.s4 1934713408
  %v1281 = vunpack.c.0.s8 %v1280
  %v1282 = vlaneseq
  %v1283 = vshrl.u32 %v1282, 7
  %v1284 = vsub.s32 %v1281, %v1283
  %v1285 = vrot.slane %v1271, %v1284
  %v1286 = vcombine.low %v1230, %v1246
  %v1287 = vcombine.high %v1230, %v1246
  %v1289 = vunpack.c.l.s4 1934713408
  %v1290 = vunpack.c.0.s8 %v1289
  %v1291 = vlaneseq
  %v1292 = vshrl.u32 %v1291, 7
  %v1293 = vsub.s32 %v1290, %v1292
  %v1294 = vrot.slane %v1286, %v1293
  %v1296 = vunpack.c.l.s4 1934713408
  %v1297 = vunpack.c.0.s8 %v1296
  %v1298 = vlaneseq
  %v1299 = vshrl.u32 %v1298, 7
  %v1300 = vsub.s32 %v1297, %v1299
  %v1301 = vrot.slane %v1287, %v1300
  %v1302 = vcombine.low %v1237, %v1253
  %v1303 = vcombine.high %v1237, %v1253
  %v1305 = vunpack.c.l.s4 1934713408
  %v1306 = vunpack.c.0.s8 %v1305
  %v1307 = vlaneseq
  %v1308 = vshrl.u32 %v1307, 7
  %v1309 = vsub.s32 %v1306, %v1308
  %v1310 = vrot.slane %v1302, %v1309
  %v1312 = vunpack.c.l.s4 1934713408
  %v1313 = vunpack.c.0.s8 %v1312
  %v1314 = vlaneseq
  %v1315 = vshrl.u32 %v1314, 7
  %v1316 = vsub.s32 %v1313, %v1315
  %v1317 = vrot.slane %v1303, %v1316
  %v1318 = vcombine.low %v1262, %v1294
  %v1319 = vcombine.high %v1262, %v1294
  %v1320 = vcombine.low %v1269, %v1301
  %v1321 = vcombine.high %v1269, %v1301
  %v1322 = vcombine.low %v1278, %v1310
  %v1323 = vcombine.high %v1278, %v1310
  %v1324 = vcombine.low %v1285, %v1317
  %v1325 = vcombine.high %v1285, %v1317
  %1327 = vrot.lane.b32.xlu0 %v1319, 64
  %v1328 = vpop.permute.xlu0 %1327
  %1331 = vrot.lane.b32.xlu0 %v1321, 64
  %v1332 = vpop.permute.xlu0 %1331
  %1335 = vrot.lane.b32.xlu0 %v1323, 64
  %v1336 = vpop.permute.xlu0 %1335
  %1339 = vrot.lane.b32.xlu0 %v1325, 64
  %v1340 = vpop.permute.xlu0 %1339
  %v1342 = vsel %vm222, %v1318, %v1328
  %v1343 = vsel %vm222, %v1320, %v1332
  %v1344 = vsel %vm222, %v1322, %v1336
  %v1345 = vsel %vm222, %v1324, %v1340
  %1346 = vst [vmem:[%s11] sm:$0xff] %v1342
  %1347 = vst [vmem:[%s11 + $0x8] sm:$0xff] %v1343
  %1348 = vst [vmem:[%s11 + $0x10] sm:$0xff] %v1344
  %1349 = vst [vmem:[%s11 + $0x18] sm:$0xff] %v1345
  %v1350 = vld [vmem:[%s6] sm:$0x1]
  %v1352 = vlaneseq
  %v1353 = vshrl.u32 %v1352, 7
  %v1354 = vsub.s32 0, %v1353
  %v1355 = vrot.slane %v1350, %v1354
  %v1357 = vmul.f32 %v1182, %v1355
  %v1358 = vmul.f32 %v1183, %v1355
  %v1359 = vmul.f32 %v1184, %v1355
  %v1360 = vmul.f32 %v1185, %v1355
  %v1361 = vmul.f32 %v1186, %v1355
  %v1362 = vmul.f32 %v1187, %v1355
  %v1363 = vmul.f32 %v1188, %v1355
  %v1364 = vmul.f32 %v1189, %v1355
  %v1365 = vsel %vm222, %v1357, 0.0
  %1366 = vadd.xlane.f32.xlu0 %v1365
  %v1367 = vpop.xlane.xlu0 %1366
  %v1368 = vsel %vm222, %v1358, 0.0
  %1369 = vadd.xlane.f32.xlu0 %v1368
  %v1370 = vpop.xlane.xlu0 %1369
  %v1371 = vsel %vm222, %v1359, 0.0
  %1372 = vadd.xlane.f32.xlu0 %v1371
  %v1373 = vpop.xlane.xlu0 %1372
  %v1374 = vsel %vm222, %v1360, 0.0
  %1375 = vadd.xlane.f32.xlu0 %v1374
  %v1376 = vpop.xlane.xlu0 %1375
  %v1377 = vsel %vm222, %v1361, 0.0
  %1378 = vadd.xlane.f32.xlu0 %v1377
  %v1379 = vpop.xlane.xlu0 %1378
  %v1380 = vsel %vm222, %v1362, 0.0
  %1381 = vadd.xlane.f32.xlu0 %v1380
  %v1382 = vpop.xlane.xlu0 %1381
  %v1383 = vsel %vm222, %v1363, 0.0
  %1384 = vadd.xlane.f32.xlu0 %v1383
  %v1385 = vpop.xlane.xlu0 %1384
  %v1386 = vsel %vm222, %v1364, 0.0
  %1387 = vadd.xlane.f32.xlu0 %v1386
  %v1388 = vpop.xlane.xlu0 %1387
  %v1389 = vld [vmem:[#allocation2] sm:$0x1]
  %v1391 = vlaneseq
  %v1392 = vshrl.u32 %v1391, 7
  %v1393 = vsub.s32 0, %v1392
  %v1394 = vrot.slane %v1389, %v1393
  %v1396 = vadd.f32 %v1367, %v1394
  %v1397 = vadd.f32 %v1370, %v1394
  %v1398 = vadd.f32 %v1373, %v1394
  %v1399 = vadd.f32 %v1376, %v1394
  %v1400 = vadd.f32 %v1379, %v1394
  %v1401 = vadd.f32 %v1382, %v1394
  %v1402 = vadd.f32 %v1385, %v1394
  %v1403 = vadd.f32 %v1388, %v1394
  %vm1404 = vcmask 7168
  %v1405 = vsel %vm1404, %v1396, -inf
  %v1406 = vsel %vm1404, %v1397, -inf
  %v1407 = vsel %vm1404, %v1398, -inf
  %v1408 = vsel %vm1404, %v1399, -inf
  %v1409 = vsel %vm1404, %v1400, -inf
  %v1410 = vmax.f32 %v1405, %v1409
  %v1411 = vsel %vm1404, %v1401, -inf
  %v1412 = vmax.f32 %v1406, %v1411
  %v1413 = vsel %vm1404, %v1402, -inf
  %v1414 = vmax.f32 %v1407, %v1413
  %v1415 = vsel %vm1404, %v1403, -inf
  %v1416 = vmax.f32 %v1408, %v1415
  %v1417 = vmax.f32 %v1410, %v1412
  %v1418 = vmax.f32 %v1414, %v1416
  %v1419 = vmax.f32 %v1417, %v1418
  %v1420 = vsub.f32 %v1396, %v1419
  %v1421 = vsub.f32 %v1397, %v1419
  %v1422 = vsub.f32 %v1398, %v1419
  %v1423 = vsub.f32 %v1399, %v1419
  %v1424 = vsub.f32 %v1400, %v1419
  %v1425 = vsub.f32 %v1401, %v1419
  %v1426 = vsub.f32 %v1402, %v1419
  %v1427 = vsub.f32 %v1403, %v1419
  %v1428 = vmul.f32 %v1420, 1.442695
  %v1429 = vpow.pop %v1428
  %v1430 = vmul.f32 %v1421, 1.442695
  %v1431 = vpow.pop %v1430
  %v1432 = vmul.f32 %v1422, 1.442695
  %v1433 = vpow.pop %v1432
  %v1434 = vmul.f32 %v1423, 1.442695
  %v1435 = vpow.pop %v1434
  %v1436 = vmul.f32 %v1424, 1.442695
  %v1437 = vpow.pop %v1436
  %v1438 = vmul.f32 %v1425, 1.442695
  %v1439 = vpow.pop %v1438
  %v1440 = vmul.f32 %v1426, 1.442695
  %v1441 = vpow.pop %v1440
  %v1442 = vmul.f32 %v1427, 1.442695
  %v1443 = vpow.pop %v1442
  %v1444 = vsel %vm1404, %v1429, 0.0
  %v1445 = vsel %vm1404, %v1431, 0.0
  %v1446 = vadd.f32 %v1444, %v1445
  %v1447 = vsel %vm1404, %v1433, 0.0
  %v1448 = vadd.f32 %v1446, %v1447
  %v1449 = vsel %vm1404, %v1435, 0.0
  %v1450 = vadd.f32 %v1448, %v1449
  %v1451 = vsel %vm1404, %v1437, 0.0
  %v1452 = vadd.f32 %v1450, %v1451
  %v1453 = vsel %vm1404, %v1439, 0.0
  %v1454 = vadd.f32 %v1452, %v1453
  %v1455 = vsel %vm1404, %v1441, 0.0
  %v1456 = vadd.f32 %v1454, %v1455
  %v1457 = vsel %vm1404, %v1443, 0.0
  %v1458 = vadd.f32 %v1456, %v1457
  %v1459 = vrcp.pop %v1458
  %v1460 = vmul.f32 %v1429, %v1459
  %v1461 = vmul.f32 %v1431, %v1459
  %v1462 = vmul.f32 %v1433, %v1459
  %v1463 = vmul.f32 %v1435, %v1459
  %v1464 = vmul.f32 %v1437, %v1459
  %v1465 = vmul.f32 %v1439, %v1459
  %v1466 = vmul.f32 %v1441, %v1459
  %v1467 = vmul.f32 %v1443, %v1459
  %1469 = vset.pattern.permute.xlu0 0
  %1470 = vperm.xlu0 %1469, %v1460
  %v1471 = vpop.permute.xlu0 %1470
  %1474 = vset.pattern.permute.xlu0 0
  %1475 = vperm.xlu0 %1474, %v1461
  %v1476 = vpop.permute.xlu0 %1475
  %1479 = vset.pattern.permute.xlu0 0
  %1480 = vperm.xlu0 %1479, %v1462
  %v1481 = vpop.permute.xlu0 %1480
  %1484 = vset.pattern.permute.xlu0 0
  %1485 = vperm.xlu0 %1484, %v1463
  %v1486 = vpop.permute.xlu0 %1485
  %1489 = vset.pattern.permute.xlu0 0
  %1490 = vperm.xlu0 %1489, %v1464
  %v1491 = vpop.permute.xlu0 %1490
  %1494 = vset.pattern.permute.xlu0 0
  %1495 = vperm.xlu0 %1494, %v1465
  %v1496 = vpop.permute.xlu0 %1495
  %1499 = vset.pattern.permute.xlu0 0
  %1500 = vperm.xlu0 %1499, %v1466
  %v1501 = vpop.permute.xlu0 %1500
  %1504 = vset.pattern.permute.xlu0 0
  %1505 = vperm.xlu0 %1504, %v1467
  %v1506 = vpop.permute.xlu0 %1505
  %v1508 = vmul.f32 %v1182, %v1471
  %v1509 = vmul.f32 %v1183, %v1476
  %v1510 = vmul.f32 %v1184, %v1481
  %v1511 = vmul.f32 %v1185, %v1486
  %v1512 = vmul.f32 %v1186, %v1491
  %v1513 = vmul.f32 %v1187, %v1496
  %v1514 = vmul.f32 %v1188, %v1501
  %v1515 = vmul.f32 %v1189, %v1506
  %v1516 = vsel %vm222, %v1508, 0.0
  %v1517 = vsel %vm222, %v1509, 0.0
  %v1518 = vadd.f32 %v1516, %v1517
  %v1519 = vsel %vm222, %v1510, 0.0
  %v1520 = vadd.f32 %v1518, %v1519
  %v1521 = vsel %vm222, %v1511, 0.0
  %v1522 = vadd.f32 %v1520, %v1521
  %v1523 = vsel %vm222, %v1512, 0.0
  %v1524 = vadd.f32 %v1522, %v1523
  %v1525 = vsel %vm222, %v1513, 0.0
  %v1526 = vadd.f32 %v1524, %v1525
  %v1527 = vsel %vm222, %v1514, 0.0
  %v1528 = vadd.f32 %v1526, %v1527
  %v1529 = vsel %vm222, %v1515, 0.0
  %v1530 = vadd.f32 %v1528, %v1529
  %v1531 = vlaneseq
  %v1532 = vand.u32 %v1531, 127
  %v1533 = vlaneseq
  %v1534 = vshrl.u32 %v1533, 7
  %v1535 = vsub.s32 %v1532, %v1534
  %v1536 = vrot.slane %v1471, %v1535
  %v1537 = vlaneseq
  %v1538 = vshrl.u32 %v1537, 7
  %v1539 = vsub.s32 %v1532, %v1538
  %v1540 = vrot.slane %v1476, %v1539
  %v1541 = vlaneseq
  %v1542 = vshrl.u32 %v1541, 7
  %v1543 = vsub.s32 %v1532, %v1542
  %v1544 = vrot.slane %v1481, %v1543
  %v1545 = vlaneseq
  %v1546 = vshrl.u32 %v1545, 7
  %v1547 = vsub.s32 %v1532, %v1546
  %v1548 = vrot.slane %v1486, %v1547
  %v1549 = vlaneseq
  %v1550 = vshrl.u32 %v1549, 7
  %v1551 = vsub.s32 %v1532, %v1550
  %v1552 = vrot.slane %v1491, %v1551
  %v1553 = vlaneseq
  %v1554 = vshrl.u32 %v1553, 7
  %v1555 = vsub.s32 %v1532, %v1554
  %v1556 = vrot.slane %v1496, %v1555
  %v1557 = vlaneseq
  %v1558 = vshrl.u32 %v1557, 7
  %v1559 = vsub.s32 %v1532, %v1558
  %v1560 = vrot.slane %v1501, %v1559
  %v1561 = vlaneseq
  %v1562 = vshrl.u32 %v1561, 7
  %v1563 = vsub.s32 %v1532, %v1562
  %v1564 = vrot.slane %v1506, %v1563
  %vm1565 = vcmask 1041409
  %v1566 = vsel %vm1565, %v1540, %v1536
  %vm1567 = vcmask 1042434
  %v1568 = vsel %vm1567, %v1544, %v1566
  %vm1569 = vcmask 1043459
  %v1570 = vsel %vm1569, %v1548, %v1568
  %vm1571 = vcmask 1044484
  %v1572 = vsel %vm1571, %v1552, %v1570
  %vm1573 = vcmask 1045509
  %v1574 = vsel %vm1573, %v1556, %v1572
  %vm1575 = vcmask 1046534
  %v1576 = vsel %vm1575, %v1560, %v1574
  %vm1577 = vcmask 1047559
  %v1578 = vsel %vm1577, %v1564, %v1576
  %1580 = vxpose.xlu0.b32.start [1/16] %v1578, 128
  %1581 = vxpose.xlu0.b32.cont [2/16] 0.0, 128
  %1582 = vxpose.xlu0.b32.cont [3/16] 0.0, 128
  %1583 = vxpose.xlu0.b32.cont [4/16] 0.0, 128
  %1584 = vxpose.xlu0.b32.cont [5/16] 0.0, 128
  %1585 = vxpose.xlu0.b32.cont [6/16] 0.0, 128
  %1586 = vxpose.xlu0.b32.cont [7/16] 0.0, 128
  %1587 = vxpose.xlu0.b32.cont [8/16] 0.0, 128
  %1588 = vxpose.xlu0.b32.cont [9/16] 0.0, 128
  %1589 = vxpose.xlu0.b32.cont [10/16] 0.0, 128
  %1590 = vxpose.xlu0.b32.cont [11/16] 0.0, 128
  %1591 = vxpose.xlu0.b32.cont [12/16] 0.0, 128
  %1592 = vxpose.xlu0.b32.cont [13/16] 0.0, 128
  %1593 = vxpose.xlu0.b32.cont [14/16] 0.0, 128
  %1594 = vxpose.xlu0.b32.cont [15/16] 0.0, 128
  %1595 = vxpose.xlu0.b32.end [16/16] 0.0, 128
  %v1596 = vpop.trf.xlu0
  %v1597 = vpop.trf.xlu0
  %v1598 = vpop.trf.xlu0
  %v1599 = vpop.trf.xlu0
  %v1600 = vpop.trf.xlu0
  %v1601 = vpop.trf.xlu0
  %v1602 = vpop.trf.xlu0
  %v1603 = vpop.trf.xlu0
  %v1604 = vpop.trf.xlu0
  %v1605 = vpop.trf.xlu0
  %v1606 = vpop.trf.xlu0
  %v1607 = vpop.trf.xlu0
  %v1608 = vpop.trf.xlu0
  %v1609 = vpop.trf.xlu0
  %v1610 = vpop.trf.xlu0
  %v1611 = vpop.trf.xlu0
  %vm1612 = vcmask 64512
  %1613 = vst.msk [vmem:[%s12] sm:$0xff] %vm1612, %v1596
  %v1614 = vld [vmem:[%s8] sm:$0xff]
  %v1615 = vld [vmem:[%s8 + $0x8] sm:$0xff]
  %v1616 = vld [vmem:[%s8 + $0x10] sm:$0xff]
  %v1617 = vld [vmem:[%s8 + $0x18] sm:$0xff]
  %v1618 = vld [vmem:[%s8 + $0x20] sm:$0xff]
  %v1619 = vld [vmem:[%s8 + $0x28] sm:$0xff]
  %v1620 = vld [vmem:[%s8 + $0x30] sm:$0xff]
  %v1621 = vld [vmem:[%s8 + $0x38] sm:$0xff]
  %v1622 = vld [vmem:[%s9] sm:$0x1]
  %v1624 = vlaneseq
  %v1625 = vshrl.u32 %v1624, 7
  %v1626 = vsub.s32 0, %v1625
  %v1627 = vrot.slane %v1622, %v1626
  %v1630 = vsel %vm222, %v1530, 0
  %1632 = vmatprep.subr.mxu0 0.0
  %1633 = vmatpush1.msra.mxu0 %v1614
  %1634 = vmatprep.subr.mxu0 0.0
  %1635 = vmatpush1.msra.mxu0 %v1615
  %1636 = vmatprep.subr.mxu0 0.0
  %1637 = vmatpush1.msra.mxu0 %v1616
  %1638 = vmatprep.subr.mxu0 0.0
  %1639 = vmatpush1.msra.mxu0 %v1617
  %1640 = vmatprep.subr.mxu0 0.0
  %1641 = vmatpush1.msra.mxu0 %v1618
  %1642 = vmatprep.subr.mxu0 0.0
  %1643 = vmatpush1.msra.mxu0 %v1619
  %1644 = vmatprep.subr.mxu0 0.0
  %1645 = vmatpush1.msra.mxu0 %v1620
  %1646 = vmatprep.subr.mxu0 0.0
  %1647 = vmatpush1.msra.mxu0 %v1621
  %1648 = vmatprep.subr.mxu0 0.0
  %1649 = vmatpush1.msra.mxu0 0.0
  %1650 = vmatprep.subr.mxu0 0.0
  %1651 = vmatpush1.msra.mxu0 0.0
  %1652 = vmatprep.subr.mxu0 0.0
  %1653 = vmatpush1.msra.mxu0 0.0
  %1654 = vmatprep.subr.mxu0 0.0
  %1655 = vmatpush1.msra.mxu0 0.0
  %1656 = vmatprep.subr.mxu0 0.0
  %1657 = vmatpush1.msra.mxu0 0.0
  %1658 = vmatprep.subr.mxu0 0.0
  %1659 = vmatpush1.msra.mxu0 0.0
  %1660 = vmatprep.subr.mxu0 0.0
  %1661 = vmatpush1.msra.mxu0 0.0
  %1662 = vmatprep.subr.mxu0 0.0
  %1663 = vmatpush1.msra.mxu0 0.0
  %1664 = vmatprep.subr.mxu0 0.0
  %1665 = vmatpush1.msra.mxu0 0.0
  %1666 = vmatprep.subr.mxu0 0.0
  %1667 = vmatpush1.msra.mxu0 0.0
  %1668 = vmatprep.subr.mxu0 0.0
  %1669 = vmatpush1.msra.mxu0 0.0
  %1670 = vmatprep.subr.mxu0 0.0
  %1671 = vmatpush1.msra.mxu0 0.0
  %1672 = vmatprep.subr.mxu0 0.0
  %1673 = vmatpush1.msra.mxu0 0.0
  %1674 = vmatprep.subr.mxu0 0.0
  %1675 = vmatpush1.msra.mxu0 0.0
  %1676 = vmatprep.subr.mxu0 0.0
  %1677 = vmatpush1.msra.mxu0 0.0
  %1678 = vmatprep.subr.mxu0 0.0
  %1679 = vmatpush1.msra.mxu0 0.0
  %1680 = vmatprep.subr.mxu0 0.0
  %1681 = vmatpush1.msra.mxu0 0.0
  %1682 = vmatprep.subr.mxu0 0.0
  %1683 = vmatpush1.msra.mxu0 0.0
  %1684 = vmatprep.subr.mxu0 0.0
  %1685 = vmatpush1.msra.mxu0 0.0
  %1686 = vmatprep.subr.mxu0 0.0
  %1687 = vmatpush1.msra.mxu0 0.0
  %1688 = vmatprep.subr.mxu0 0.0
  %1689 = vmatpush1.msra.mxu0 0.0
  %1690 = vmatprep.subr.mxu0 0.0
  %1691 = vmatpush1.msra.mxu0 0.0
  %1692 = vmatprep.subr.mxu0 0.0
  %1693 = vmatpush1.msra.mxu0 0.0
  %1694 = vmatprep.subr.mxu0 0.0
  %1695 = vmatpush1.msra.mxu0 0.0
  %1696 = vmatprep.mubr.f32.mxu0 0.0
  %1697 = vmatmul.mubr.f32.gmra.mrb[0].mxu0 %v1630
  %v1698 = vpop.f32.mrb[0].mxu0
  %v1699 = vadd.f32 %v1627, %v1698
  %v1700 = vpop.f32.mrb[0].mxu0
  %1701 = vdwg.mxu0
  %1702 = vst.msk [vmem:[%s10] sm:$0xff] %vm222, %v1699
  // Predicated region
  $region42: #{encoder_vae_forward.1} parent=0 // pred_check
    _
  $region43: #{encoder_vae_forward.1} parent=0 // pred_check_branch
    %1704 = sbr.rel (0) target = $region45
  $region44: #{encoder_vae_forward.1} parent=0 // pred_region
    _
  $region45: #{encoder_vae_forward.1} parent=0 // pred_fallthru
    _
  // Predicated region
  $region46: #{encoder_vae_forward.1} parent=0 // pred_check
    _
  $region47: #{encoder_vae_forward.1} parent=0 // pred_check_branch
    %1706 = sbr.rel (0) target = $region49
  $region48: #{encoder_vae_forward.1} parent=0 // pred_region
    _
  $region49: #{encoder_vae_forward.1} parent=0 // pred_fallthru
    _
  // Predicated region
  $region50: #{encoder_vae_forward.1} parent=0 // pred_check
    _
  $region51: #{encoder_vae_forward.1} parent=0 // pred_check_branch
    %1708 = sbr.rel (0) target = $region53
  $region52: #{encoder_vae_forward.1} parent=0 // pred_region
    _
  $region53: #{encoder_vae_forward.1} parent=0 // pred_fallthru
    _
  // Predicated region
  $region54: #{encoder_vae_forward.1} parent=0 // pred_check
    _
  $region55: #{encoder_vae_forward.1} parent=0 // pred_check_branch
    %1710 = sbr.rel (0) target = $region57
  $region56: #{encoder_vae_forward.1} parent=0 // pred_region
    _
  $region57: #{encoder_vae_forward.1} parent=0 // pred_fallthru
    _
  // Predicated region
  $region58: #{encoder_vae_forward.1} parent=0 // pred_check
    _
  $region59: #{encoder_vae_forward.1} parent=0 // pred_check_branch
    %1712 = sbr.rel (0) target = $region61
  $region60: #{encoder_vae_forward.1} parent=0 // pred_region
    _
  $region61: #{encoder_vae_forward.1} parent=0 // pred_fallthru
    _
  // Predicated region
  $region62: #{encoder_vae_forward.1} parent=0 // pred_check
    _
  $region63: #{encoder_vae_forward.1} parent=0 // pred_check_branch
    %1714 = sbr.rel (0) target = $region65
  $region64: #{encoder_vae_forward.1} parent=0 // pred_region
    _
  $region65: #{encoder_vae_forward.1} parent=0 // pred_fallthru
    _

</llo_original>
